<compile_context>
chip_gen: v5e
topology: v5e:2x2
jax: 0.10.0
libtpu: 0.0.40
codegen_flags: <defaults>
</compile_context>

<pallas_src>
import jax
import jax.numpy as jnp
from jax.experimental import pallas as pl
from jax.experimental.pallas import tpu as pltpu


_CONV_SPECS = [(4, 40), (40, 56), (56, 32), (32, 16), (16, 8)]
_TOTAL_POOL = 32          # 4 * 2 * 2 * 2


# ------------------------------ pooling helper ------------------------------

def _maxpool_cl(y, hbuf, H, W, C, k):
    """Channels-last k x k max pool of a (H*W, C) value (rows in (h, w) raster).

    H-direction: tile-preserving (Ho, k, W, C) view + (k-1) whole-array maxes
    when W % 8 == 0 (the big stages); otherwise a tiny static slab loop (the
    late stages where W in {2, 4} and Ho <= 2 per tile).  Only the k-times
    reduced result is stored (once) to `hbuf`; the W-direction then uses k
    sublane-strided reads (stride=k), so no per-window gather loop is unrolled.
    """
    Ho, Wo = H // k, W // k
    if W % 8 == 0:
        # (H*W, C) -> (Ho, k, W, C) keeps the (8, 128) tiling intact since
        # W % 8 == 0, so the reshape is metadata-only; the max is pure VPU.
        y4 = y.reshape(Ho, k, W, C)
        acc = y4[:, 0]
        for i in range(1, k):
            acc = jnp.maximum(acc, y4[:, i])
        hbuf[...] = acc.reshape(Ho * W, C)
    else:
        for a in range(Ho):
            acc = y[k * a * W:(k * a + 1) * W, :]
            for i in range(1, k):
                acc = jnp.maximum(acc, y[(k * a + i) * W:(k * a + i + 1) * W, :])
            hbuf[pl.ds(a * W, W), :] = acc
    n = Ho * Wo
    out = hbuf[pl.ds(0, n, stride=k), :]
    for j in range(1, k):
        out = jnp.maximum(out, hbuf[pl.ds(j, n, stride=k), :])
    return out                                   # (Ho*Wo, C), raster (ho, wo)


# --------------------------------- kernel -----------------------------------

def _make_kernel(TH, W0):
    """Fused conv/pool chain for one (TH x W0)-row tile of one batch element."""

    def conv(y, w_ref, b_ref):
        z = jnp.dot(y, w_ref[...], preferred_element_type=jnp.float32)
        return jnp.maximum(z + b_ref[...], 0.0)

    def kernel(x_ref, w1t_ref, b1t_ref, w2_ref, b2_ref, w3_ref, b3_ref,
               w4_ref, b4_ref, w5_ref, b5_ref, o_ref,
               hbuf1, hbuf2, hbuf3, hbuf4):
        # ---- conv1 straight off the NCHW tile (no pre-kernel transpose) ----
        # x: (4, P) with P = TH*W0 pixels on the lane axis -> the matmul output,
        # bias add and ReLU are all lane-dense (unmasked stores).
        x = x_ref[0]                                                # (4, P)
        y1t = jnp.dot(w1t_ref[...], x, preferred_element_type=jnp.float32)
        y1t = jnp.maximum(y1t + b1t_ref[...], 0.0)                  # (40, P)
        # Single in-VMEM transpose (XLU slot, MXU/VPU stay free) to channels-
        # last for the pooled chain; (40, P) has both dims (8,128)-aligned.
        y = jnp.transpose(y1t, (1, 0))                              # (P, 40)

        H, W = TH, W0
        y = _maxpool_cl(y, hbuf1, H, W, 40, 4); H //= 4; W //= 4    # pool1
        y = conv(y, w2_ref, b2_ref)                                 # conv2
        y = conv(y, w3_ref, b3_ref)                                 # conv3
        y = _maxpool_cl(y, hbuf2, H, W, 32, 2); H //= 2; W //= 2    # pool2
        y = conv(y, w4_ref, b4_ref)                                 # conv4
        y = _maxpool_cl(y, hbuf3, H, W, 16, 2); H //= 2; W //= 2    # pool3
        y = conv(y, w5_ref, b5_ref)                                 # conv5
        y = _maxpool_cl(y, hbuf4, H, W, 8, 2)                       # pool4
        o_ref[0] = y                               # ((TH//32)*(W0//32), 8)

    return kernel


# ------------------------------ model wrapper -------------------------------

def _pick_tile_rows(H0, W0, max_pixels=16 * 1024):
    """Rows per grid step: multiple of 32, divides H0, bounded VMEM footprint."""
    if H0 * W0 <= max_pixels:
        return H0
    Wf = W0 // 32
    best = None
    for t in range(32, H0 + 1, 32):
        if H0 % t or t * W0 > max_pixels:
            continue
        # keep the per-tile output block sublane-aligned when tiling H
        if ((t // 32) * Wf) % 8 == 0:
            best = t
    return best if best is not None else H0


@jax.jit
def model_enc_forward(x_nchw, params):
    """Forward pass equivalent to model_Enc.forward.  x: (B, 4, H, W) NCHW."""
    B, Cin, H0, W0 = x_nchw.shape
    assert Cin == _CONV_SPECS[0][0]
    assert H0 % _TOTAL_POOL == 0 and W0 % _TOTAL_POOL == 0, \
        "spatial dims must survive the 4*2*2*2 pooling chain"

    TH = _pick_tile_rows(H0, W0)
    nH = H0 // TH
    P = TH * W0
    Hf, Wf = H0 // 32, W0 // 32
    rows_out = (TH // 32) * Wf

    (w1, b1), (w2, b2), (w3, b3), (w4, b4), (w5, b5) = params
    wb = [w1.T, b1.reshape(-1, 1),               # conv1 used in transposed form
          w2, b2.reshape(1, -1), w3, b3.reshape(1, -1),
          w4, b4.reshape(1, -1), w5, b5.reshape(1, -1)]

    # Free, contiguous reshape only — the input stays NCHW in HBM.
    x3 = x_nchw.reshape(B, 4, H0 * W0)

    def full_spec(a):
        shp = a.shape
        return pl.BlockSpec(shp, lambda b, t, _s=shp: (0,) * len(_s))

    in_specs = ([pl.BlockSpec((1, 4, P), lambda b, t: (b, 0, t))]
                + [full_spec(a) for a in wb])
    out_spec = pl.BlockSpec((1, rows_out, 8), lambda b, t: (b, t, 0))

    c1, _c2, c3, c4, c5 = (cout for _, cout in _CONV_SPECS)
    scratch = [
        pltpu.VMEM(((TH // 4) * W0, c1), jnp.float32),            # pool1 H-pass
        pltpu.VMEM(((TH // 8) * (W0 // 4), c3), jnp.float32),     # pool2 H-pass
        pltpu.VMEM(((TH // 16) * (W0 // 8), c4), jnp.float32),    # pool3 H-pass
        pltpu.VMEM(((TH // 32) * (W0 // 16), c5), jnp.float32),   # pool4 H-pass
    ]

    pix = H0 * W0
    flops = 2 * B * (pix * 4 * 40
                     + (pix // 16) * (40 * 56 + 56 * 32)
                     + (pix // 64) * (32 * 16)
                     + (pix // 256) * (16 * 8))
    bytes_accessed = 4 * (B * 4 * pix + B * Hf * Wf * 8
                          + sum(int(a.size) for a in wb))

    out = pl.pallas_call(
        _make_kernel(TH, W0),
        out_shape=jax.ShapeDtypeStruct((B, Hf * Wf, 8), jnp.float32),
        grid=(B, nH),
        in_specs=in_specs,
        out_specs=out_spec,
        scratch_shapes=scratch,
        compiler_params=pltpu.CompilerParams(
            dimension_semantics=("parallel", "parallel")),
        cost_estimate=pl.CostEstimate(
            flops=flops, transcendentals=0, bytes_accessed=bytes_accessed),
    )(x3, *wb)

    # Tiny output reorder (channels ahead of the pooled spatial dims) so the
    # flatten matches torch's .view(B, -1) on the NCHW result.
    return out.transpose(0, 2, 1).reshape(B, 8 * Hf * Wf)


def init_params(key):
    """Deterministic init mirroring nn.Conv2d default (uniform +-1/sqrt(fan_in))."""
    params = []
    for i, (cin, cout) in enumerate(_CONV_SPECS):
        kw, kb = jax.random.split(jax.random.fold_in(key, i))
        bound = 1.0 / float(cin) ** 0.5          # 1x1 kernel -> fan_in = cin
        w = jax.random.uniform(kw, (cin, cout), jnp.float32, -bound, bound)
        b = jax.random.uniform(kb, (cout,), jnp.float32, -bound, bound)
        params.append((w, b))
    return params


# ----------------------------- reference check ------------------------------

def _ref_forward(x_nchw, params):
    """Pure-JAX reference (channels-last compute, NCHW-order flatten)."""
    x = jnp.transpose(x_nchw, (0, 2, 3, 1))

    def conv(x, w, b):
        return jnp.maximum(jnp.einsum("bhwc,cd->bhwd", x, w) + b, 0.0)

    def pool(x, k):
        B, H, W, C = x.shape
        return jnp.max(x.reshape(B, H // k, k, W // k, k, C), axis=(2, 4))

    x = pool(conv(x, *params[0]), 4)
    x = conv(x, *params[1])
    x = pool(conv(x, *params[2]), 2)
    x = pool(conv(x, *params[3]), 2)
    x = pool(conv(x, *params[4]), 2)
    return jnp.transpose(x, (0, 3, 1, 2)).reshape(x.shape[0], -1)


# --------------------------------- driver -----------------------------------

if __name__ == "__main__":
    key = jax.random.PRNGKey(0)
    params = init_params(jax.random.fold_in(key, 1))
    # Smallest spatial size that survives the 4/2/2/2 pooling chain is 32.
    x = jax.random.normal(jax.random.fold_in(key, 2), (2, 4, 32, 32), jnp.float32)

    out = jax.block_until_ready(model_enc_forward(x, params))
    assert out.shape == (2, 8), out.shape

    ref = jax.block_until_ready(_ref_forward(x, params))
    max_err = float(jnp.max(jnp.abs(out - ref)))
    assert jnp.allclose(out, ref, atol=1e-4, rtol=1e-4), max_err

    print("KERNEL_OK")
</pallas_src>

<mosaic_0001>
module attributes {stable_mosaic.version = 11 : i64} {
  func.func @kernel(%arg0: i32, %arg1: i32, %arg2: memref<1x4x1024xf32, #tpu.memory_space<vmem>>, %arg3: memref<40x4xf32, #tpu.memory_space<vmem>>, %arg4: memref<40x1xf32, #tpu.memory_space<vmem>>, %arg5: memref<40x56xf32, #tpu.memory_space<vmem>>, %arg6: memref<1x56xf32, #tpu.memory_space<vmem>>, %arg7: memref<56x32xf32, #tpu.memory_space<vmem>>, %arg8: memref<1x32xf32, #tpu.memory_space<vmem>>, %arg9: memref<32x16xf32, #tpu.memory_space<vmem>>, %arg10: memref<1x16xf32, #tpu.memory_space<vmem>>, %arg11: memref<16x8xf32, #tpu.memory_space<vmem>>, %arg12: memref<1x8xf32, #tpu.memory_space<vmem>>, %arg13: memref<1x1x8xf32, #tpu.memory_space<vmem>>, %arg14: memref<256x40xf32, #tpu.memory_space<vmem>>, %arg15: memref<32x32xf32, #tpu.memory_space<vmem>>, %arg16: memref<8x16xf32, #tpu.memory_space<vmem>>, %arg17: memref<2x8xf32, #tpu.memory_space<vmem>>) attributes {dimension_semantics = [#tpu.dimension_semantics<parallel>, #tpu.dimension_semantics<parallel>], iteration_bounds = array<i64: 2, 1>, scalar_prefetch = 0 : i64, scratch_operands = 4 : i64, tpu.core_type = #tpu.core_type<tc>, window_params = [{transform_indices = @transform_0, window_bounds = array<i64: 1, 4, 1024>}, {pipeline_mode = #tpu.pipeline_mode<synchronous>, transform_indices = @transform_1, window_bounds = array<i64: 40, 4>}, {pipeline_mode = #tpu.pipeline_mode<synchronous>, transform_indices = @transform_2, window_bounds = array<i64: 40, 1>}, {pipeline_mode = #tpu.pipeline_mode<synchronous>, transform_indices = @transform_3, window_bounds = array<i64: 40, 56>}, {pipeline_mode = #tpu.pipeline_mode<synchronous>, transform_indices = @transform_4, window_bounds = array<i64: 1, 56>}, {pipeline_mode = #tpu.pipeline_mode<synchronous>, transform_indices = @transform_5, window_bounds = array<i64: 56, 32>}, {pipeline_mode = #tpu.pipeline_mode<synchronous>, transform_indices = @transform_6, window_bounds = array<i64: 1, 32>}, {pipeline_mode = #tpu.pipeline_mode<synchronous>, transform_indices = @transform_7, window_bounds = array<i64: 32, 16>}, {pipeline_mode = #tpu.pipeline_mode<synchronous>, transform_indices = @transform_8, window_bounds = array<i64: 1, 16>}, {pipeline_mode = #tpu.pipeline_mode<synchronous>, transform_indices = @transform_9, window_bounds = array<i64: 16, 8>}, {pipeline_mode = #tpu.pipeline_mode<synchronous>, transform_indices = @transform_10, window_bounds = array<i64: 1, 8>}, {transform_indices = @transform_11, window_bounds = array<i64: 1, 1, 8>}]} {
    %c0 = arith.constant 0 : index
    %c0_0 = arith.constant 0 : index
    %c0_1 = arith.constant 0 : index
    %0 = vector.load %arg2[%c0, %c0_0, %c0_1] : memref<1x4x1024xf32, #tpu.memory_space<vmem>>, vector<1x4x1024xf32>
    %1 = vector.shape_cast %0 : vector<1x4x1024xf32> to vector<4x1024xf32>
    %c0_2 = arith.constant 0 : index
    %c0_3 = arith.constant 0 : index
    %2 = vector.load %arg3[%c0_2, %c0_3] : memref<40x4xf32, #tpu.memory_space<vmem>>, vector<40x4xf32>
    %cst = arith.constant dense<0.000000e+00> : vector<40x1024xf32>
    %3 = tpu.matmul %2, %1, %cst {dimension_numbers = #tpu.dot_dimension_numbers<[1], [0], [0], [1], [0, 0, 1, 1], [], []>} : vector<40x4xf32>, vector<4x1024xf32>, vector<40x1024xf32> -> vector<40x1024xf32>
    %c0_4 = arith.constant 0 : index
    %c0_5 = arith.constant 0 : index
    %4 = vector.load %arg4[%c0_4, %c0_5] : memref<40x1xf32, #tpu.memory_space<vmem>>, vector<40x1xf32>
    %5 = vector.broadcast %4 : vector<40x1xf32> to vector<40x1024xf32>
    %6 = arith.addf %3, %5 : vector<40x1024xf32>
    %cst_6 = arith.constant 0.000000e+00 : f32
    %7 = vector.broadcast %cst_6 : f32 to vector<40x1024xf32>
    %8 = arith.maximumf %6, %7 : vector<40x1024xf32>
    %9 = tpu.transpose %8, [1, 0] : vector<40x1024xf32> -> vector<1024x40xf32>
    %10 = vector.shape_cast %9 : vector<1024x40xf32> to vector<8x4x32x40xf32>
    %11 = vector.extract_strided_slice %10 {offsets = [0, 0, 0, 0], sizes = [8, 1, 32, 40], strides = [1, 1, 1, 1]} : vector<8x4x32x40xf32> to vector<8x1x32x40xf32>
    %12 = vector.shape_cast %11 : vector<8x1x32x40xf32> to vector<8x32x40xf32>
    %13 = vector.extract_strided_slice %10 {offsets = [0, 1, 0, 0], sizes = [8, 1, 32, 40], strides = [1, 1, 1, 1]} : vector<8x4x32x40xf32> to vector<8x1x32x40xf32>
    %14 = vector.shape_cast %13 : vector<8x1x32x40xf32> to vector<8x32x40xf32>
    %15 = arith.maximumf %12, %14 : vector<8x32x40xf32>
    %16 = vector.extract_strided_slice %10 {offsets = [0, 2, 0, 0], sizes = [8, 1, 32, 40], strides = [1, 1, 1, 1]} : vector<8x4x32x40xf32> to vector<8x1x32x40xf32>
    %17 = vector.shape_cast %16 : vector<8x1x32x40xf32> to vector<8x32x40xf32>
    %18 = arith.maximumf %15, %17 : vector<8x32x40xf32>
    %19 = vector.extract_strided_slice %10 {offsets = [0, 3, 0, 0], sizes = [8, 1, 32, 40], strides = [1, 1, 1, 1]} : vector<8x4x32x40xf32> to vector<8x1x32x40xf32>
    %20 = vector.shape_cast %19 : vector<8x1x32x40xf32> to vector<8x32x40xf32>
    %21 = arith.maximumf %18, %20 : vector<8x32x40xf32>
    %22 = vector.shape_cast %21 : vector<8x32x40xf32> to vector<256x40xf32>
    %c0_7 = arith.constant 0 : index
    %c0_8 = arith.constant 0 : index
    %23 = vector.load %arg14[%c0_7, %c0_8] : memref<256x40xf32, #tpu.memory_space<vmem>>, vector<256x40xf32>
    tpu.vector_store %arg14[%c0_7, %c0_8], %22 {strides = array<i32>} : memref<256x40xf32, #tpu.memory_space<vmem>>, vector<256x40xf32>,
    %c0_9 = arith.constant 0 : index
    %c0_10 = arith.constant 0 : index
    %24 = tpu.strided_load %arg14[%c0_9, %c0_10] {strides = array<i32: 4, 1>} : memref<256x40xf32, #tpu.memory_space<vmem>>, vector<64x40xf32>
    %c1 = arith.constant 1 : index
    %c0_11 = arith.constant 0 : index
    %25 = tpu.strided_load %arg14[%c1, %c0_11] {strides = array<i32: 4, 1>} : memref<256x40xf32, #tpu.memory_space<vmem>>, vector<64x40xf32>
    %26 = arith.maximumf %24, %25 : vector<64x40xf32>
    %c2 = arith.constant 2 : index
    %c0_12 = arith.constant 0 : index
    %27 = tpu.strided_load %arg14[%c2, %c0_12] {strides = array<i32: 4, 1>} : memref<256x40xf32, #tpu.memory_space<vmem>>, vector<64x40xf32>
    %28 = arith.maximumf %26, %27 : vector<64x40xf32>
    %c3 = arith.constant 3 : index
    %c0_13 = arith.constant 0 : index
    %29 = tpu.strided_load %arg14[%c3, %c0_13] {strides = array<i32: 4, 1>} : memref<256x40xf32, #tpu.memory_space<vmem>>, vector<64x40xf32>
    %30 = arith.maximumf %28, %29 : vector<64x40xf32>
    %c0_14 = arith.constant 0 : index
    %c0_15 = arith.constant 0 : index
    %31 = vector.load %arg5[%c0_14, %c0_15] : memref<40x56xf32, #tpu.memory_space<vmem>>, vector<40x56xf32>
    %cst_16 = arith.constant dense<0.000000e+00> : vector<64x56xf32>
    %32 = tpu.matmul %30, %31, %cst_16 {dimension_numbers = #tpu.dot_dimension_numbers<[1], [0], [0], [1], [0, 0, 1, 1], [], []>} : vector<64x40xf32>, vector<40x56xf32>, vector<64x56xf32> -> vector<64x56xf32>
    %c0_17 = arith.constant 0 : index
    %c0_18 = arith.constant 0 : index
    %33 = vector.load %arg6[%c0_17, %c0_18] : memref<1x56xf32, #tpu.memory_space<vmem>>, vector<1x56xf32>
    %34 = vector.broadcast %33 : vector<1x56xf32> to vector<64x56xf32>
    %35 = arith.addf %32, %34 : vector<64x56xf32>
    %cst_19 = arith.constant 0.000000e+00 : f32
    %36 = vector.broadcast %cst_19 : f32 to vector<64x56xf32>
    %37 = arith.maximumf %35, %36 : vector<64x56xf32>
    %c0_20 = arith.constant 0 : index
    %c0_21 = arith.constant 0 : index
    %38 = vector.load %arg7[%c0_20, %c0_21] : memref<56x32xf32, #tpu.memory_space<vmem>>, vector<56x32xf32>
    %cst_22 = arith.constant dense<0.000000e+00> : vector<64x32xf32>
    %39 = tpu.matmul %37, %38, %cst_22 {dimension_numbers = #tpu.dot_dimension_numbers<[1], [0], [0], [1], [0, 0, 1, 1], [], []>} : vector<64x56xf32>, vector<56x32xf32>, vector<64x32xf32> -> vector<64x32xf32>
    %c0_23 = arith.constant 0 : index
    %c0_24 = arith.constant 0 : index
    %40 = vector.load %arg8[%c0_23, %c0_24] : memref<1x32xf32, #tpu.memory_space<vmem>>, vector<1x32xf32>
    %41 = vector.broadcast %40 : vector<1x32xf32> to vector<64x32xf32>
    %42 = arith.addf %39, %41 : vector<64x32xf32>
    %cst_25 = arith.constant 0.000000e+00 : f32
    %43 = vector.broadcast %cst_25 : f32 to vector<64x32xf32>
    %44 = arith.maximumf %42, %43 : vector<64x32xf32>
    %45 = vector.shape_cast %44 : vector<64x32xf32> to vector<4x2x8x32xf32>
    %46 = vector.extract_strided_slice %45 {offsets = [0, 0, 0, 0], sizes = [4, 1, 8, 32], strides = [1, 1, 1, 1]} : vector<4x2x8x32xf32> to vector<4x1x8x32xf32>
    %47 = vector.shape_cast %46 : vector<4x1x8x32xf32> to vector<4x8x32xf32>
    %48 = vector.extract_strided_slice %45 {offsets = [0, 1, 0, 0], sizes = [4, 1, 8, 32], strides = [1, 1, 1, 1]} : vector<4x2x8x32xf32> to vector<4x1x8x32xf32>
    %49 = vector.shape_cast %48 : vector<4x1x8x32xf32> to vector<4x8x32xf32>
    %50 = arith.maximumf %47, %49 : vector<4x8x32xf32>
    %51 = vector.shape_cast %50 : vector<4x8x32xf32> to vector<32x32xf32>
    %c0_26 = arith.constant 0 : index
    %c0_27 = arith.constant 0 : index
    %52 = vector.load %arg15[%c0_26, %c0_27] : memref<32x32xf32, #tpu.memory_space<vmem>>, vector<32x32xf32>
    tpu.vector_store %arg15[%c0_26, %c0_27], %51 {strides = array<i32>} : memref<32x32xf32, #tpu.memory_space<vmem>>, vector<32x32xf32>,
    %c0_28 = arith.constant 0 : index
    %c0_29 = arith.constant 0 : index
    %53 = tpu.strided_load %arg15[%c0_28, %c0_29] {strides = array<i32: 2, 1>} : memref<32x32xf32, #tpu.memory_space<vmem>>, vector<16x32xf32>
    %c1_30 = arith.constant 1 : index
    %c0_31 = arith.constant 0 : index
    %54 = tpu.strided_load %arg15[%c1_30, %c0_31] {strides = array<i32: 2, 1>} : memref<32x32xf32, #tpu.memory_space<vmem>>, vector<16x32xf32>
    %55 = arith.maximumf %53, %54 : vector<16x32xf32>
    %c0_32 = arith.constant 0 : index
    %c0_33 = arith.constant 0 : index
    %56 = vector.load %arg9[%c0_32, %c0_33] : memref<32x16xf32, #tpu.memory_space<vmem>>, vector<32x16xf32>
    %cst_34 = arith.constant dense<0.000000e+00> : vector<16x16xf32>
    %57 = tpu.matmul %55, %56, %cst_34 {dimension_numbers = #tpu.dot_dimension_numbers<[1], [0], [0], [1], [0, 0, 1, 1], [], []>} : vector<16x32xf32>, vector<32x16xf32>, vector<16x16xf32> -> vector<16x16xf32>
    %c0_35 = arith.constant 0 : index
    %c0_36 = arith.constant 0 : index
    %58 = vector.load %arg10[%c0_35, %c0_36] : memref<1x16xf32, #tpu.memory_space<vmem>>, vector<1x16xf32>
    %59 = vector.broadcast %58 : vector<1x16xf32> to vector<16x16xf32>
    %60 = arith.addf %57, %59 : vector<16x16xf32>
    %cst_37 = arith.constant 0.000000e+00 : f32
    %61 = vector.broadcast %cst_37 : f32 to vector<16x16xf32>
    %62 = arith.maximumf %60, %61 : vector<16x16xf32>
    %63 = vector.extract_strided_slice %62 {offsets = [0, 0], sizes = [4, 16], strides = [1, 1]} : vector<16x16xf32> to vector<4x16xf32>
    %64 = vector.extract_strided_slice %62 {offsets = [4, 0], sizes = [4, 16], strides = [1, 1]} : vector<16x16xf32> to vector<4x16xf32>
    %65 = arith.maximumf %63, %64 : vector<4x16xf32>
    %c0_38 = arith.constant 0 : index
    %c0_39 = arith.constant 0 : index
    %66 = vector.load %arg16[%c0_38, %c0_39] : memref<8x16xf32, #tpu.memory_space<vmem>>, vector<4x16xf32>
    tpu.vector_store %arg16[%c0_38, %c0_39], %65 {strides = array<i32>} : memref<8x16xf32, #tpu.memory_space<vmem>>, vector<4x16xf32>,
    %67 = vector.extract_strided_slice %62 {offsets = [8, 0], sizes = [4, 16], strides = [1, 1]} : vector<16x16xf32> to vector<4x16xf32>
    %68 = vector.extract_strided_slice %62 {offsets = [12, 0], sizes = [4, 16], strides = [1, 1]} : vector<16x16xf32> to vector<4x16xf32>
    %69 = arith.maximumf %67, %68 : vector<4x16xf32>
    %c4 = arith.constant 4 : index
    %c0_40 = arith.constant 0 : index
    %70 = vector.load %arg16[%c4, %c0_40] : memref<8x16xf32, #tpu.memory_space<vmem>>, vector<4x16xf32>
    tpu.vector_store %arg16[%c4, %c0_40], %69 {strides = array<i32>} : memref<8x16xf32, #tpu.memory_space<vmem>>, vector<4x16xf32>,
    %c0_41 = arith.constant 0 : index
    %c0_42 = arith.constant 0 : index
    %71 = tpu.strided_load %arg16[%c0_41, %c0_42] {strides = array<i32: 2, 1>} : memref<8x16xf32, #tpu.memory_space<vmem>>, vector<4x16xf32>
    %c1_43 = arith.constant 1 : index
    %c0_44 = arith.constant 0 : index
    %72 = tpu.strided_load %arg16[%c1_43, %c0_44] {strides = array<i32: 2, 1>} : memref<8x16xf32, #tpu.memory_space<vmem>>, vector<4x16xf32>
    %73 = arith.maximumf %71, %72 : vector<4x16xf32>
    %c0_45 = arith.constant 0 : index
    %c0_46 = arith.constant 0 : index
    %74 = vector.load %arg11[%c0_45, %c0_46] : memref<16x8xf32, #tpu.memory_space<vmem>>, vector<16x8xf32>
    %cst_47 = arith.constant dense<0.000000e+00> : vector<4x8xf32>
    %75 = tpu.matmul %73, %74, %cst_47 {dimension_numbers = #tpu.dot_dimension_numbers<[1], [0], [0], [1], [0, 0, 1, 1], [], []>} : vector<4x16xf32>, vector<16x8xf32>, vector<4x8xf32> -> vector<4x8xf32>
    %c0_48 = arith.constant 0 : index
    %c0_49 = arith.constant 0 : index
    %76 = vector.load %arg12[%c0_48, %c0_49] : memref<1x8xf32, #tpu.memory_space<vmem>>, vector<1x8xf32>
    %77 = vector.broadcast %76 : vector<1x8xf32> to vector<4x8xf32>
    %78 = arith.addf %75, %77 : vector<4x8xf32>
    %cst_50 = arith.constant 0.000000e+00 : f32
    %79 = vector.broadcast %cst_50 : f32 to vector<4x8xf32>
    %80 = arith.maximumf %78, %79 : vector<4x8xf32>
    %81 = vector.extract_strided_slice %80 {offsets = [0, 0], sizes = [2, 8], strides = [1, 1]} : vector<4x8xf32> to vector<2x8xf32>
    %82 = vector.extract_strided_slice %80 {offsets = [2, 0], sizes = [2, 8], strides = [1, 1]} : vector<4x8xf32> to vector<2x8xf32>
    %83 = arith.maximumf %81, %82 : vector<2x8xf32>
    %c0_51 = arith.constant 0 : index
    %c0_52 = arith.constant 0 : index
    %84 = vector.load %arg17[%c0_51, %c0_52] : memref<2x8xf32, #tpu.memory_space<vmem>>, vector<2x8xf32>
    tpu.vector_store %arg17[%c0_51, %c0_52], %83 {strides = array<i32>} : memref<2x8xf32, #tpu.memory_space<vmem>>, vector<2x8xf32>,
    %c0_53 = arith.constant 0 : index
    %c0_54 = arith.constant 0 : index
    %85 = tpu.strided_load %arg17[%c0_53, %c0_54] {strides = array<i32: 2, 1>} : memref<2x8xf32, #tpu.memory_space<vmem>>, vector<1x8xf32>
    %c1_55 = arith.constant 1 : index
    %c0_56 = arith.constant 0 : index
    %86 = tpu.strided_load %arg17[%c1_55, %c0_56] {strides = array<i32: 2, 1>} : memref<2x8xf32, #tpu.memory_space<vmem>>, vector<1x8xf32>
    %87 = arith.maximumf %85, %86 : vector<1x8xf32>
    %c0_57 = arith.constant 0 : index
    %c0_58 = arith.constant 0 : index
    %c0_59 = arith.constant 0 : index
    %88 = vector.load %arg13[%c0_57, %c0_58, %c0_59] : memref<1x1x8xf32, #tpu.memory_space<vmem>>, vector<1x1x8xf32>
    %89 = vector.shape_cast %88 : vector<1x1x8xf32> to vector<1x8xf32>
    %90 = vector.shape_cast %87 : vector<1x8xf32> to vector<1x1x8xf32>
    tpu.vector_store %arg13[%c0_57, %c0_58, %c0_59], %90 {strides = array<i32>} : memref<1x1x8xf32, #tpu.memory_space<vmem>>, vector<1x1x8xf32>,
    return
  }
  func.func @transform_0(%arg0: i32, %arg1: i32) -> (i32, i32, i32) {
    %c0_i32 = arith.constant 0 : i32
    %c0_i32_0 = arith.constant 0 : i32
    return %arg0, %c0_i32, %arg1 : i32, i32, i32
  }
  func.func @transform_1(%arg0: i32, %arg1: i32) -> (i32, i32) {
    %c0_i32 = arith.constant 0 : i32
    %c0_i32_0 = arith.constant 0 : i32
    %c0_i32_1 = arith.constant 0 : i32
    return %c0_i32, %c0_i32_0 : i32, i32
  }
  func.func @transform_2(%arg0: i32, %arg1: i32) -> (i32, i32) {
    %c0_i32 = arith.constant 0 : i32
    %c0_i32_0 = arith.constant 0 : i32
    %c0_i32_1 = arith.constant 0 : i32
    return %c0_i32, %c0_i32_0 : i32, i32
  }
  func.func @transform_3(%arg0: i32, %arg1: i32) -> (i32, i32) {
    %c0_i32 = arith.constant 0 : i32
    %c0_i32_0 = arith.constant 0 : i32
    %c0_i32_1 = arith.constant 0 : i32
    return %c0_i32, %c0_i32_0 : i32, i32
  }
  func.func @transform_4(%arg0: i32, %arg1: i32) -> (i32, i32) {
    %c0_i32 = arith.constant 0 : i32
    %c0_i32_0 = arith.constant 0 : i32
    %c0_i32_1 = arith.constant 0 : i32
    return %c0_i32, %c0_i32_0 : i32, i32
  }
  func.func @transform_5(%arg0: i32, %arg1: i32) -> (i32, i32) {
    %c0_i32 = arith.constant 0 : i32
    %c0_i32_0 = arith.constant 0 : i32
    %c0_i32_1 = arith.constant 0 : i32
    return %c0_i32, %c0_i32_0 : i32, i32
  }
  func.func @transform_6(%arg0: i32, %arg1: i32) -> (i32, i32) {
    %c0_i32 = arith.constant 0 : i32
    %c0_i32_0 = arith.constant 0 : i32
    %c0_i32_1 = arith.constant 0 : i32
    return %c0_i32, %c0_i32_0 : i32, i32
  }
  func.func @transform_7(%arg0: i32, %arg1: i32) -> (i32, i32) {
    %c0_i32 = arith.constant 0 : i32
    %c0_i32_0 = arith.constant 0 : i32
    %c0_i32_1 = arith.constant 0 : i32
    return %c0_i32, %c0_i32_0 : i32, i32
  }
  func.func @transform_8(%arg0: i32, %arg1: i32) -> (i32, i32) {
    %c0_i32 = arith.constant 0 : i32
    %c0_i32_0 = arith.constant 0 : i32
    %c0_i32_1 = arith.constant 0 : i32
    return %c0_i32, %c0_i32_0 : i32, i32
  }
  func.func @transform_9(%arg0: i32, %arg1: i32) -> (i32, i32) {
    %c0_i32 = arith.constant 0 : i32
    %c0_i32_0 = arith.constant 0 : i32
    %c0_i32_1 = arith.constant 0 : i32
    return %c0_i32, %c0_i32_0 : i32, i32
  }
  func.func @transform_10(%arg0: i32, %arg1: i32) -> (i32, i32) {
    %c0_i32 = arith.constant 0 : i32
    %c0_i32_0 = arith.constant 0 : i32
    %c0_i32_1 = arith.constant 0 : i32
    return %c0_i32, %c0_i32_0 : i32, i32
  }
  func.func @transform_11(%arg0: i32, %arg1: i32) -> (i32, i32, i32) {
    %c0_i32 = arith.constant 0 : i32
    %c0_i32_0 = arith.constant 0 : i32
    return %arg0, %arg1, %c0_i32 : i32, i32, i32
  }
}

</mosaic_0001>

<llo_original>
// kernel: model_enc_forward.1
$region0: #{model_enc_forward.1}
  #allocation0 [shape = 'u32[]', space=smem, size = 0x4, offset = 0x4, fixed_abs, tag = 'smem constant byte address 0x4 - core index']
  #allocation1 [shape = 'u32[72,128]{1,0:T(1,128)}', space=vmem, size = 0x9000, scoped, tag = 'internal scratch']
  #allocation2 [shape = 'f32[256,40]{1,0:T(8,128)}', space=vmem, size = 0x20000, scoped, tag = 'scratch operand']
  #allocation3 [shape = 'f32[32,32]{1,0:T(8,128)}', space=vmem, size = 0x4000, scoped, tag = 'scratch operand']
  #allocation4 [shape = 'f32[8,16]{1,0:T(8,128)}', space=vmem, size = 0x1000, scoped, tag = 'scratch operand']
  #allocation5 [shape = 'f32[2,8]{1,0:T(2,128)}', space=vmem, size = 0x400, scoped, tag = 'scratch operand']
  %s0 = inlined_call_operand.vmem [shape: f32[2,4,1024], index: 0, kind: input, shape index: {}]
  %s1 = inlined_call_operand.vmem [shape: f32[40,4], index: 1, kind: input, shape index: {}]
  %s2 = inlined_call_operand.vmem [shape: f32[40,1], index: 2, kind: input, shape index: {}]
  %s3 = inlined_call_operand.vmem [shape: f32[40,56], index: 3, kind: input, shape index: {}]
  %s4 = inlined_call_operand.vmem [shape: f32[1,56], index: 4, kind: input, shape index: {}]
  %s5 = inlined_call_operand.vmem [shape: f32[56,32], index: 5, kind: input, shape index: {}]
  %s6 = inlined_call_operand.vmem [shape: f32[1,32], index: 6, kind: input, shape index: {}]
  %s7 = inlined_call_operand.vmem [shape: f32[32,16], index: 7, kind: input, shape index: {}]
  %s8 = inlined_call_operand.vmem [shape: f32[1,16], index: 8, kind: input, shape index: {}]
  %s9 = inlined_call_operand.vmem [shape: f32[16,8], index: 9, kind: input, shape index: {}]
  %s10 = inlined_call_operand.vmem [shape: f32[1,8], index: 10, kind: input, shape index: {}]
  %s11 = inlined_call_operand.hbm [shape: f32[2,1,8], index: 11, kind: output, shape index: {}]
  %s12 = sld [smem:[#allocation0]]
  $region77: #{model_enc_forward.1} parent=0
    _
  %s14 = ssub.s32 1, %s12
  %s15 = scalar_select 0, %s14, %s12
  $region1: #{model_enc_forward.1} parent=0
    #allocation6 [shape = 'u8[1024]{0}', space=vmem, size = 0x400, scoped, tag = 'output window, operand 0']
    #allocation7 [shape = 's32[2]{0}', space=sflag, size = 0x8, scoped, tag = 'scoped memory for model_enc_forward.1']
    %16 = vsyncpa [#allocation7], 0
    %s17 = scalar_lea.sflag [#allocation7], 1
    %18 = vsyncpa %s17, 0
    loop: start=0, step=1, limit=4
    $region2: #{model_enc_forward.1} parent=1 // loop_pre_header
      _
    $region3: #{model_enc_forward.1} parent=1 // loop_header
      %s20 = sphi 0, %s24
      %p21 = scmp.ge.s32.totalorder %s20, 4
      %s27 = sphi 0, %s39
      %s28 = sphi 0, %s35
      %s29 = sphi 0, %s27
      %s30 = sphi 0, %s28
      %s31 = sphi 0, %s29
      %s32 = sphi 0, %s30
      %s44 = sphi 0, %s46
      %s47 = sphi 0, %s44
      %s48 = sphi 0, %s47
      %s64 = sphi 0, %s48
      %s68 = sphi 0, %s68
      %s70 = sphi 0, %s68
      %s71 = sphi 0, %s70
      %s85 = sphi 0, %s71
      %s89 = sphi 0, %s89
      %s91 = sphi 0, %s89
      %s92 = sphi 0, %s91
      %s106 = sphi 0, %s92
      %s110 = sphi 0, %s110
      %s112 = sphi 0, %s110
      %s113 = sphi 0, %s112
      %s127 = sphi 0, %s113
      %s131 = sphi 0, %s131
      %s133 = sphi 0, %s131
      %s134 = sphi 0, %s133
      %s148 = sphi 0, %s134
      %s152 = sphi 0, %s152
      %s154 = sphi 0, %s152
      %s155 = sphi 0, %s154
      %s169 = sphi 0, %s155
      %s173 = sphi 0, %s173
      %s175 = sphi 0, %s173
      %s176 = sphi 0, %s175
      %s190 = sphi 0, %s176
      %s194 = sphi 0, %s194
      %s196 = sphi 0, %s194
      %s197 = sphi 0, %s196
      %s211 = sphi 0, %s197
      %s215 = sphi 0, %s215
      %s217 = sphi 0, %s215
      %s218 = sphi 0, %s217
      %s232 = sphi 0, %s218
      %s236 = sphi 0, %s236
      %s238 = sphi 0, %s236
      %s239 = sphi 0, %s238
      %s253 = sphi 0, %s239
      %s257 = sphi 0, %s257
      %s259 = sphi 0, %s257
      %s260 = sphi 0, %s259
      %s274 = sphi 0, %s260
      %s282 = sphi 0, %s284
      %s285 = sphi 0, %s282
      %s286 = sphi 0, %s285
      %s302 = sphi 0, %s286
    $region4: #{model_enc_forward.1} parent=1 // loop_header_branch
      %23 = sbr.rel (%p21) target = $region8
    $region5: #{model_enc_forward.1} parent=1 // loop_body
      %s25 = ssub.s32 %s20, 1
      %s26 = ssub.s32 %s20, 2
      %s33 = sadd.s32 1, %s28
      %p34 = scmp.ge.s32.totalorder %s33, 1
      %s35 = scalar_select %p34, 0, %s33
      %s36 = sadd.s32 1, %s27
      %s37 = scalar_select %p34, %s36, %s27
      %p38 = scmp.ge.s32.totalorder %s37, 2
      %s39 = scalar_select %p38, 0, %s37
      %s40 = ssub.s32 %s27, %s39
      %s41 = ssub.s32 %s28, %s35
      %s42 = sor.u32 %s40, %s41
      %p43 = scmp.eq.s32.totalorder %s42, 0
      %s45 = sadd.s32 %s44, 1
      %s46 = scalar_select %p43, %s44, %s45
      %p49 = pneg %p43
      %p50 = scmp.eq.s32.totalorder %s20, 1
      %p51 = por %p49, %p50
      %p52 = scmp.ne.s32.totalorder %s44, %s47
      %p53 = scmp.eq.s32.totalorder %s20, 0
      %p54 = por %p52, %p53
      %p55 = scmp.ne.s32.totalorder %s44, %s47
      %p56 = scmp.eq.s32.totalorder %s25, 1
      %p57 = por %p55, %p56
      %p58 = scmp.ne.s32.totalorder %s47, %s48
      %p59 = scmp.eq.s32.totalorder %s25, 0
      %p60 = por %p58, %p59
      %p61 = scmp.ne.s32.totalorder %s47, %s48
      %p62 = scmp.eq.s32.totalorder %s26, 1
      %p63 = por %p61, %p62
      %p65 = scmp.ne.s32.totalorder %s48, %s64
      %p66 = scmp.eq.s32.totalorder %s26, 0
      %p67 = por %p65, %p66
      %s69 = sadd.s32 %s68, 1
      %p72 = scmp.eq.s32.totalorder %s20, 1
      %p73 = scmp.ne.s32.totalorder %s68, %s70
      %p74 = scmp.eq.s32.totalorder %s20, 0
      %p75 = por %p73, %p74
      %p76 = scmp.ne.s32.totalorder %s68, %s70
      %p77 = scmp.eq.s32.totalorder %s25, 1
      %p78 = por %p76, %p77
      %p79 = scmp.ne.s32.totalorder %s70, %s71
      %p80 = scmp.eq.s32.totalorder %s25, 0
      %p81 = por %p79, %p80
      %p82 = scmp.ne.s32.totalorder %s70, %s71
      %p83 = scmp.eq.s32.totalorder %s26, 1
      %p84 = por %p82, %p83
      %p86 = scmp.ne.s32.totalorder %s71, %s85
      %p87 = scmp.eq.s32.totalorder %s26, 0
      %p88 = por %p86, %p87
      %s90 = sadd.s32 %s89, 1
      %p93 = scmp.eq.s32.totalorder %s20, 1
      %p94 = scmp.ne.s32.totalorder %s89, %s91
      %p95 = scmp.eq.s32.totalorder %s20, 0
      %p96 = por %p94, %p95
      %p97 = scmp.ne.s32.totalorder %s89, %s91
      %p98 = scmp.eq.s32.totalorder %s25, 1
      %p99 = por %p97, %p98
      %p100 = scmp.ne.s32.totalorder %s91, %s92
      %p101 = scmp.eq.s32.totalorder %s25, 0
      %p102 = por %p100, %p101
      %p103 = scmp.ne.s32.totalorder %s91, %s92
      %p104 = scmp.eq.s32.totalorder %s26, 1
      %p105 = por %p103, %p104
      %p107 = scmp.ne.s32.totalorder %s92, %s106
      %p108 = scmp.eq.s32.totalorder %s26, 0
      %p109 = por %p107, %p108
      %s111 = sadd.s32 %s110, 1
      %p114 = scmp.eq.s32.totalorder %s20, 1
      %p115 = scmp.ne.s32.totalorder %s110, %s112
      %p116 = scmp.eq.s32.totalorder %s20, 0
      %p117 = por %p115, %p116
      %p118 = scmp.ne.s32.totalorder %s110, %s112
      %p119 = scmp.eq.s32.totalorder %s25, 1
      %p120 = por %p118, %p119
      %p121 = scmp.ne.s32.totalorder %s112, %s113
      %p122 = scmp.eq.s32.totalorder %s25, 0
      %p123 = por %p121, %p122
      %p124 = scmp.ne.s32.totalorder %s112, %s113
      %p125 = scmp.eq.s32.totalorder %s26, 1
      %p126 = por %p124, %p125
      %p128 = scmp.ne.s32.totalorder %s113, %s127
      %p129 = scmp.eq.s32.totalorder %s26, 0
      %p130 = por %p128, %p129
      %s132 = sadd.s32 %s131, 1
      %p135 = scmp.eq.s32.totalorder %s20, 1
      %p136 = scmp.ne.s32.totalorder %s131, %s133
      %p137 = scmp.eq.s32.totalorder %s20, 0
      %p138 = por %p136, %p137
      %p139 = scmp.ne.s32.totalorder %s131, %s133
      %p140 = scmp.eq.s32.totalorder %s25, 1
      %p141 = por %p139, %p140
      %p142 = scmp.ne.s32.totalorder %s133, %s134
      %p143 = scmp.eq.s32.totalorder %s25, 0
      %p144 = por %p142, %p143
      %p145 = scmp.ne.s32.totalorder %s133, %s134
      %p146 = scmp.eq.s32.totalorder %s26, 1
      %p147 = por %p145, %p146
      %p149 = scmp.ne.s32.totalorder %s134, %s148
      %p150 = scmp.eq.s32.totalorder %s26, 0
      %p151 = por %p149, %p150
      %s153 = sadd.s32 %s152, 1
      %p156 = scmp.eq.s32.totalorder %s20, 1
      %p157 = scmp.ne.s32.totalorder %s152, %s154
      %p158 = scmp.eq.s32.totalorder %s20, 0
      %p159 = por %p157, %p158
      %p160 = scmp.ne.s32.totalorder %s152, %s154
      %p161 = scmp.eq.s32.totalorder %s25, 1
      %p162 = por %p160, %p161
      %p163 = scmp.ne.s32.totalorder %s154, %s155
      %p164 = scmp.eq.s32.totalorder %s25, 0
      %p165 = por %p163, %p164
      %p166 = scmp.ne.s32.totalorder %s154, %s155
      %p167 = scmp.eq.s32.totalorder %s26, 1
      %p168 = por %p166, %p167
      %p170 = scmp.ne.s32.totalorder %s155, %s169
      %p171 = scmp.eq.s32.totalorder %s26, 0
      %p172 = por %p170, %p171
      %s174 = sadd.s32 %s173, 1
      %p177 = scmp.eq.s32.totalorder %s20, 1
      %p178 = scmp.ne.s32.totalorder %s173, %s175
      %p179 = scmp.eq.s32.totalorder %s20, 0
      %p180 = por %p178, %p179
      %p181 = scmp.ne.s32.totalorder %s173, %s175
      %p182 = scmp.eq.s32.totalorder %s25, 1
      %p183 = por %p181, %p182
      %p184 = scmp.ne.s32.totalorder %s175, %s176
      %p185 = scmp.eq.s32.totalorder %s25, 0
      %p186 = por %p184, %p185
      %p187 = scmp.ne.s32.totalorder %s175, %s176
      %p188 = scmp.eq.s32.totalorder %s26, 1
      %p189 = por %p187, %p188
      %p191 = scmp.ne.s32.totalorder %s176, %s190
      %p192 = scmp.eq.s32.totalorder %s26, 0
      %p193 = por %p191, %p192
      %s195 = sadd.s32 %s194, 1
      %p198 = scmp.eq.s32.totalorder %s20, 1
      %p199 = scmp.ne.s32.totalorder %s194, %s196
      %p200 = scmp.eq.s32.totalorder %s20, 0
      %p201 = por %p199, %p200
      %p202 = scmp.ne.s32.totalorder %s194, %s196
      %p203 = scmp.eq.s32.totalorder %s25, 1
      %p204 = por %p202, %p203
      %p205 = scmp.ne.s32.totalorder %s196, %s197
      %p206 = scmp.eq.s32.totalorder %s25, 0
      %p207 = por %p205, %p206
      %p208 = scmp.ne.s32.totalorder %s196, %s197
      %p209 = scmp.eq.s32.totalorder %s26, 1
      %p210 = por %p208, %p209
      %p212 = scmp.ne.s32.totalorder %s197, %s211
      %p213 = scmp.eq.s32.totalorder %s26, 0
      %p214 = por %p212, %p213
      %s216 = sadd.s32 %s215, 1
      %p219 = scmp.eq.s32.totalorder %s20, 1
      %p220 = scmp.ne.s32.totalorder %s215, %s217
      %p221 = scmp.eq.s32.totalorder %s20, 0
      %p222 = por %p220, %p221
      %p223 = scmp.ne.s32.totalorder %s215, %s217
      %p224 = scmp.eq.s32.totalorder %s25, 1
      %p225 = por %p223, %p224
      %p226 = scmp.ne.s32.totalorder %s217, %s218
      %p227 = scmp.eq.s32.totalorder %s25, 0
      %p228 = por %p226, %p227
      %p229 = scmp.ne.s32.totalorder %s217, %s218
      %p230 = scmp.eq.s32.totalorder %s26, 1
      %p231 = por %p229, %p230
      %p233 = scmp.ne.s32.totalorder %s218, %s232
      %p234 = scmp.eq.s32.totalorder %s26, 0
      %p235 = por %p233, %p234
      %s237 = sadd.s32 %s236, 1
      %p240 = scmp.eq.s32.totalorder %s20, 1
      %p241 = scmp.ne.s32.totalorder %s236, %s238
      %p242 = scmp.eq.s32.totalorder %s20, 0
      %p243 = por %p241, %p242
      %p244 = scmp.ne.s32.totalorder %s236, %s238
      %p245 = scmp.eq.s32.totalorder %s25, 1
      %p246 = por %p244, %p245
      %p247 = scmp.ne.s32.totalorder %s238, %s239
      %p248 = scmp.eq.s32.totalorder %s25, 0
      %p249 = por %p247, %p248
      %p250 = scmp.ne.s32.totalorder %s238, %s239
      %p251 = scmp.eq.s32.totalorder %s26, 1
      %p252 = por %p250, %p251
      %p254 = scmp.ne.s32.totalorder %s239, %s253
      %p255 = scmp.eq.s32.totalorder %s26, 0
      %p256 = por %p254, %p255
      %s258 = sadd.s32 %s257, 1
      %p261 = scmp.eq.s32.totalorder %s20, 1
      %p262 = scmp.ne.s32.totalorder %s257, %s259
      %p263 = scmp.eq.s32.totalorder %s20, 0
      %p264 = por %p262, %p263
      %p265 = scmp.ne.s32.totalorder %s257, %s259
      %p266 = scmp.eq.s32.totalorder %s25, 1
      %p267 = por %p265, %p266
      %p268 = scmp.ne.s32.totalorder %s259, %s260
      %p269 = scmp.eq.s32.totalorder %s25, 0
      %p270 = por %p268, %p269
      %p271 = scmp.ne.s32.totalorder %s259, %s260
      %p272 = scmp.eq.s32.totalorder %s26, 1
      %p273 = por %p271, %p272
      %p275 = scmp.ne.s32.totalorder %s260, %s274
      %p276 = scmp.eq.s32.totalorder %s26, 0
      %p277 = por %p275, %p276
      %s278 = ssub.s32 %s27, %s39
      %s279 = ssub.s32 %s28, %s35
      %s280 = sor.u32 %s278, %s279
      %p281 = scmp.eq.s32.totalorder %s280, 0
      %s283 = sadd.s32 %s282, 1
      %s284 = scalar_select %p281, %s282, %s283
      %p287 = pneg %p281
      %p288 = scmp.eq.s32.totalorder %s20, 1
      %p289 = por %p287, %p288
      %p290 = scmp.ne.s32.totalorder %s282, %s285
      %p291 = scmp.eq.s32.totalorder %s20, 0
      %p292 = por %p290, %p291
      %p293 = scmp.ne.s32.totalorder %s282, %s285
      %p294 = scmp.eq.s32.totalorder %s25, 1
      %p295 = por %p293, %p294
      %p296 = scmp.ne.s32.totalorder %s285, %s286
      %p297 = scmp.eq.s32.totalorder %s25, 0
      %p298 = por %p296, %p297
      %p299 = scmp.ne.s32.totalorder %s285, %s286
      %p300 = scmp.eq.s32.totalorder %s26, 1
      %p301 = por %p299, %p300
      %p303 = scmp.ne.s32.totalorder %s286, %s302
      %p304 = scmp.eq.s32.totalorder %s26, 0
      %p305 = por %p303, %p304
      %p306 = scmp.le.s32.totalorder 1, %s20
      %p307 = scmp.lt.s32.totalorder %s20, 3
      %p308 = pnand %p306, %p307
      %p309 = pneg %p308
      // Predicated region
      $region9: #{model_enc_forward.1} parent=5 // pred_check
        _
      $region10: #{model_enc_forward.1} parent=5 // pred_check_branch
        %311 = sbr.rel (%p308) target = $region12
      $region11: #{model_enc_forward.1} parent=5 // pred_region
        %s312 = ssub.s32 %s20, 1
        // Predicated region
        $region13: #{model_enc_forward.1} parent=11 // pred_check
          %p313 = pneg %p81
        $region14: #{model_enc_forward.1} parent=11 // pred_check_branch
          %315 = sbr.rel (%p313) target = $region16
        $region15: #{model_enc_forward.1} parent=11 // pred_region
          _
        $region16: #{model_enc_forward.1} parent=11 // pred_fallthru
          _
        // Predicated region
        $region17: #{model_enc_forward.1} parent=11 // pred_check
          %p316 = pneg %p102
        $region18: #{model_enc_forward.1} parent=11 // pred_check_branch
          %318 = sbr.rel (%p316) target = $region20
        $region19: #{model_enc_forward.1} parent=11 // pred_region
          _
        $region20: #{model_enc_forward.1} parent=11 // pred_fallthru
          _
        // Predicated region
        $region21: #{model_enc_forward.1} parent=11 // pred_check
          %p319 = pneg %p123
        $region22: #{model_enc_forward.1} parent=11 // pred_check_branch
          %321 = sbr.rel (%p319) target = $region24
        $region23: #{model_enc_forward.1} parent=11 // pred_region
          _
        $region24: #{model_enc_forward.1} parent=11 // pred_fallthru
          _
        // Predicated region
        $region25: #{model_enc_forward.1} parent=11 // pred_check
          %p322 = pneg %p144
        $region26: #{model_enc_forward.1} parent=11 // pred_check_branch
          %324 = sbr.rel (%p322) target = $region28
        $region27: #{model_enc_forward.1} parent=11 // pred_region
          _
        $region28: #{model_enc_forward.1} parent=11 // pred_fallthru
          _
        // Predicated region
        $region29: #{model_enc_forward.1} parent=11 // pred_check
          %p325 = pneg %p165
        $region30: #{model_enc_forward.1} parent=11 // pred_check_branch
          %327 = sbr.rel (%p325) target = $region32
        $region31: #{model_enc_forward.1} parent=11 // pred_region
          _
        $region32: #{model_enc_forward.1} parent=11 // pred_fallthru
          _
        // Predicated region
        $region33: #{model_enc_forward.1} parent=11 // pred_check
          %p328 = pneg %p186
        $region34: #{model_enc_forward.1} parent=11 // pred_check_branch
          %330 = sbr.rel (%p328) target = $region36
        $region35: #{model_enc_forward.1} parent=11 // pred_region
          _
        $region36: #{model_enc_forward.1} parent=11 // pred_fallthru
          _
        // Predicated region
        $region37: #{model_enc_forward.1} parent=11 // pred_check
          %p331 = pneg %p207
        $region38: #{model_enc_forward.1} parent=11 // pred_check_branch
          %333 = sbr.rel (%p331) target = $region40
        $region39: #{model_enc_forward.1} parent=11 // pred_region
          _
        $region40: #{model_enc_forward.1} parent=11 // pred_fallthru
          _
        // Predicated region
        $region41: #{model_enc_forward.1} parent=11 // pred_check
          %p334 = pneg %p228
        $region42: #{model_enc_forward.1} parent=11 // pred_check_branch
          %336 = sbr.rel (%p334) target = $region44
        $region43: #{model_enc_forward.1} parent=11 // pred_region
          _
        $region44: #{model_enc_forward.1} parent=11 // pred_fallthru
          _
        // Predicated region
        $region45: #{model_enc_forward.1} parent=11 // pred_check
          %p337 = pneg %p249
        $region46: #{model_enc_forward.1} parent=11 // pred_check_branch
          %339 = sbr.rel (%p337) target = $region48
        $region47: #{model_enc_forward.1} parent=11 // pred_region
          _
        $region48: #{model_enc_forward.1} parent=11 // pred_fallthru
          _
        // Predicated region
        $region49: #{model_enc_forward.1} parent=11 // pred_check
          %p340 = pneg %p270
        $region50: #{model_enc_forward.1} parent=11 // pred_check_branch
          %342 = sbr.rel (%p340) target = $region52
        $region51: #{model_enc_forward.1} parent=11 // pred_region
          _
        $region52: #{model_enc_forward.1} parent=11 // pred_fallthru
          _
      $region12: #{model_enc_forward.1} parent=5 // pred_fallthru
        _
      %p343 = scmp.lt.s32.totalorder %s20, 2
      // Predicated region
      $region53: #{model_enc_forward.1} parent=5 // pred_check
        %p344 = pneg %p343
      $region54: #{model_enc_forward.1} parent=5 // pred_check_branch
        %346 = sbr.rel (%p344) target = $region56
      $region55: #{model_enc_forward.1} parent=5 // pred_region
        // Predicated region
        $region57: #{model_enc_forward.1} parent=55 // pred_check
          %p347 = pneg %p54
        $region58: #{model_enc_forward.1} parent=55 // pred_check_branch
          %349 = sbr.rel (%p347) target = $region60
        $region59: #{model_enc_forward.1} parent=55 // pred_region
          %s350 = smul.u32 8, %s28
          %p351 = scmp.lt.s32.totalorder %s27, 1
          %s352 = scalar_select %p351, %s27, 1
          %p353 = scmp.lt.s32.totalorder %s350, 7
          %s354 = scalar_select %p353, %s350, 7
          %s355 = smul.addr %s352, 8
          %s356 = sadd.s32 %s354, %s355
          %s357 = smul.addr %s356, 4
          %s358 = scalar_lea.vmem %s0, %s357
          %s359 = smul.u32 8, %s28
        $region60: #{model_enc_forward.1} parent=55 // pred_fallthru
          _
      $region56: #{model_enc_forward.1} parent=5 // pred_fallthru
        _
      %p360 = scmp.le.s32.totalorder 1, %s20
      %p361 = scmp.lt.s32.totalorder %s20, 3
      %p362 = pnand %p360, %p361
      %p363 = pneg %p362
      // Predicated region
      $region61: #{model_enc_forward.1} parent=5 // pred_check
        _
      $region62: #{model_enc_forward.1} parent=5 // pred_check_branch
        %365 = sbr.rel (%p362) target = $region64
      $region63: #{model_enc_forward.1} parent=5 // pred_region
        %s366 = ssub.s32 %s20, 1
        %s367 = smul.u32 8, %s30
        %p368 = scmp.lt.s32.totalorder %s29, 1
        %s369 = scalar_select %p368, %s29, 1
        %p370 = scmp.lt.s32.totalorder %s367, 7
        %s371 = scalar_select %p370, %s367, 7
        %s372 = smul.addr %s369, 8
        %s373 = sadd.s32 %s371, %s372
        %s374 = smul.addr %s373, 4
        %s375 = scalar_lea.vmem %s0, %s374
        %p376 = pneg %p60
        %p377 = pneg %p57
        %p378 = pneg %p81
        %p379 = pneg %p78
        %p380 = pneg %p102
        %p381 = pneg %p99
        %p382 = pneg %p123
        %p383 = pneg %p120
        %p384 = pneg %p144
        %p385 = pneg %p141
        %p386 = pneg %p165
        %p387 = pneg %p162
        %p388 = pneg %p186
        %p389 = pneg %p183
        %p390 = pneg %p207
        %p391 = pneg %p204
        %p392 = pneg %p228
        %p393 = pneg %p225
        %p394 = pneg %p249
        %p395 = pneg %p246
        %p396 = pneg %p270
        %p397 = pneg %p267
        %p398 = pneg %p298
        %p399 = pneg %p295
        %s400 = sand.u32 %s285, 1
        %s401 = scalar_lea.sflag [#allocation7], %s400
        %s402 = sand.u32 %s285, 1
        %s403 = scalar_lea.vmem [#allocation6], %s402
        %s404 = smul.u32 8, %s30
        %p405 = scmp.lt.s32.totalorder %s29, 1
        %s406 = scalar_select %p405, %s29, 1
        %p407 = scmp.lt.s32.totalorder %s404, 7
        %s408 = scalar_select %p407, %s404, 7
        %s409 = smul.addr %s406, 8
        %s410 = sadd.s32 %s408, %s409
        %s411 = smul.addr %s410, 4
        %s412 = scalar_lea.vmem %s0, %s411
        %s413 = smul.u32 8, %s30
        %v414 = vld [vmem:[%s412] sm:$0xff]
        %v415 = vld [vmem:[%s412 + $0x8] sm:$0xff]
        %v416 = vld [vmem:[%s412 + $0x10] sm:$0xff]
        %v417 = vld [vmem:[%s412 + $0x18] sm:$0xff]
        %v418 = vld [vmem:[%s1] sm:$0xff]
        %v419 = vld [vmem:[%s1 + $0x8] sm:$0xff]
        %v420 = vld [vmem:[%s1 + $0x10] sm:$0xff]
        %v421 = vld [vmem:[%s1 + $0x18] sm:$0xff]
        %v422 = vld [vmem:[%s1 + $0x20] sm:$0xff]
        %v423 = vld [vmem:[%s2] sm:$0xff]
        %v424 = vld [vmem:[%s2 + $0x8] sm:$0xff]
        %v425 = vld [vmem:[%s2 + $0x10] sm:$0xff]
        %v426 = vld [vmem:[%s2 + $0x18] sm:$0xff]
        %v427 = vld [vmem:[%s2 + $0x20] sm:$0xff]
        %429 = vset.pattern.permute.xlu0 0
        %430 = vperm.xlu0 %429, %v423
        %v431 = vpop.permute.xlu0 %430
        %434 = vset.pattern.permute.xlu0 0
        %435 = vperm.xlu0 %434, %v424
        %v436 = vpop.permute.xlu0 %435
        %439 = vset.pattern.permute.xlu0 0
        %440 = vperm.xlu0 %439, %v425
        %v441 = vpop.permute.xlu0 %440
        %444 = vset.pattern.permute.xlu0 0
        %445 = vperm.xlu0 %444, %v426
        %v446 = vpop.permute.xlu0 %445
        %449 = vset.pattern.permute.xlu0 0
        %450 = vperm.xlu0 %449, %v427
        %v451 = vpop.permute.xlu0 %450
        %457 = vst [vmem:[#allocation1] ss:$2 sm:$0xff] %v414
        %s458 = scalar_lea.vmem [#allocation1], 16
        %459 = vst [vmem:[%s458] ss:$2 sm:$0xff] %v415
        %s460 = scalar_lea.vmem [#allocation1], 32
        %461 = vst [vmem:[%s460] ss:$2 sm:$0xff] %v416
        %s462 = scalar_lea.vmem [#allocation1], 48
        %463 = vst [vmem:[%s462] ss:$2 sm:$0xff] %v417
        %v464 = vld.sshfl [vmem:[#allocation1] sm:$0xff pattern:$0x75316420]
        %v465 = vld.sshfl [vmem:[#allocation1 + $0x8] sm:$0xff pattern:$0x75316420]
        %v466 = vld.sshfl [vmem:[#allocation1 + $0x10] sm:$0xff pattern:$0x75316420]
        %v467 = vld.sshfl [vmem:[#allocation1 + $0x18] sm:$0xff pattern:$0x75316420]
        %v468 = vld.sshfl [vmem:[#allocation1 + $0x20] sm:$0xff pattern:$0x75316420]
        %v469 = vld.sshfl [vmem:[#allocation1 + $0x28] sm:$0xff pattern:$0x75316420]
        %v470 = vld.sshfl [vmem:[#allocation1 + $0x30] sm:$0xff pattern:$0x75316420]
        %v471 = vld.sshfl [vmem:[#allocation1 + $0x38] sm:$0xff pattern:$0x75316420]
        %vm472 = vcmask 31744
        %v474 = vsel %vm472, %v418, 0
        %v477 = vsel %vm472, %v419, 0
        %v480 = vsel %vm472, %v420, 0
        %v483 = vsel %vm472, %v421, 0
        %v486 = vsel %vm472, %v422, 0
        %vm488 = vcmask 1043456
        %v489 = vsel %vm488, %v464, 0
        %v491 = vsel %vm488, %v465, 0
        %v493 = vsel %vm488, %v466, 0
        %v495 = vsel %vm488, %v467, 0
        %v497 = vsel %vm488, %v468, 0
        %v499 = vsel %vm488, %v469, 0
        %v501 = vsel %vm488, %v470, 0
        %v503 = vsel %vm488, %v471, 0
        %505 = vmatpush.msra.mxu0 0.0
        %506 = vmatpush.msra.mxu0 0.0
        %507 = vmatpush.msra.mxu0 0.0
        %508 = vmatpush.msra.mxu0 0.0
        %509 = vmatpush.msra.mxu0 0.0
        %510 = vmatpush.msra.mxu0 0.0
        %511 = vmatpush.msra.mxu0 0.0
        %512 = vmatpush.msra.mxu0 0.0
        %513 = vmatpush.msra.mxu0 0.0
        %514 = vmatpush.msra.mxu0 0.0
        %515 = vmatpush.msra.mxu0 0.0
        %516 = vmatpush.msra.mxu0 0.0
        %517 = vmatpush.msra.mxu0 0.0
        %518 = vmatpush.msra.mxu0 0.0
        %519 = vmatpush.msra.mxu0 0.0
        %520 = vmatpush.msra.mxu0 %v489
        %521 = vmatmul.f32.gmra.mxu0 %v474
        %v522 = vpop.f32.mrf.mxu0
        %v523 = vadd.f32 %v431, %v522
        %524 = vmatmul.f32.gmra.mxu0 %v477
        %v525 = vpop.f32.mrf.mxu0
        %v526 = vadd.f32 %v436, %v525
        %527 = vmatmul.f32.gmra.mxu0 %v480
        %v528 = vpop.f32.mrf.mxu0
        %v529 = vadd.f32 %v441, %v528
        %530 = vmatmul.f32.gmra.mxu0 %v483
        %v531 = vpop.f32.mrf.mxu0
        %v532 = vadd.f32 %v446, %v531
        %533 = vmatmul.f32.gmra.mxu0 %v486
        %v534 = vpop.f32.mrf.mxu0
        %v535 = vadd.f32 %v451, %v534
        %536 = vdwg.mxu0
        %537 = vmatpush.msra.mxu0 0.0
        %538 = vmatpush.msra.mxu0 0.0
        %539 = vmatpush.msra.mxu0 0.0
        %540 = vmatpush.msra.mxu0 0.0
        %541 = vmatpush.msra.mxu0 0.0
        %542 = vmatpush.msra.mxu0 0.0
        %543 = vmatpush.msra.mxu0 0.0
        %544 = vmatpush.msra.mxu0 0.0
        %545 = vmatpush.msra.mxu0 0.0
        %546 = vmatpush.msra.mxu0 0.0
        %547 = vmatpush.msra.mxu0 0.0
        %548 = vmatpush.msra.mxu0 0.0
        %549 = vmatpush.msra.mxu0 0.0
        %550 = vmatpush.msra.mxu0 0.0
        %551 = vmatpush.msra.mxu0 0.0
        %552 = vmatpush.msra.mxu0 %v491
        %553 = vmatmul.f32.gmra.mxu0 %v474
        %v554 = vpop.f32.mrf.mxu0
        %v555 = vadd.f32 %v431, %v554
        %556 = vmatmul.f32.gmra.mxu0 %v477
        %v557 = vpop.f32.mrf.mxu0
        %v558 = vadd.f32 %v436, %v557
        %559 = vmatmul.f32.gmra.mxu0 %v480
        %v560 = vpop.f32.mrf.mxu0
        %v561 = vadd.f32 %v441, %v560
        %562 = vmatmul.f32.gmra.mxu0 %v483
        %v563 = vpop.f32.mrf.mxu0
        %v564 = vadd.f32 %v446, %v563
        %565 = vmatmul.f32.gmra.mxu0 %v486
        %v566 = vpop.f32.mrf.mxu0
        %v567 = vadd.f32 %v451, %v566
        %568 = vdwg.mxu0
        %569 = vmatpush.msra.mxu0 0.0
        %570 = vmatpush.msra.mxu0 0.0
        %571 = vmatpush.msra.mxu0 0.0
        %572 = vmatpush.msra.mxu0 0.0
        %573 = vmatpush.msra.mxu0 0.0
        %574 = vmatpush.msra.mxu0 0.0
        %575 = vmatpush.msra.mxu0 0.0
        %576 = vmatpush.msra.mxu0 0.0
        %577 = vmatpush.msra.mxu0 0.0
        %578 = vmatpush.msra.mxu0 0.0
        %579 = vmatpush.msra.mxu0 0.0
        %580 = vmatpush.msra.mxu0 0.0
        %581 = vmatpush.msra.mxu0 0.0
        %582 = vmatpush.msra.mxu0 0.0
        %583 = vmatpush.msra.mxu0 0.0
        %584 = vmatpush.msra.mxu0 %v493
        %585 = vmatmul.f32.gmra.mxu0 %v474
        %v586 = vpop.f32.mrf.mxu0
        %v587 = vadd.f32 %v431, %v586
        %588 = vmatmul.f32.gmra.mxu0 %v477
        %v589 = vpop.f32.mrf.mxu0
        %v590 = vadd.f32 %v436, %v589
        %591 = vmatmul.f32.gmra.mxu0 %v480
        %v592 = vpop.f32.mrf.mxu0
        %v593 = vadd.f32 %v441, %v592
        %594 = vmatmul.f32.gmra.mxu0 %v483
        %v595 = vpop.f32.mrf.mxu0
        %v596 = vadd.f32 %v446, %v595
        %597 = vmatmul.f32.gmra.mxu0 %v486
        %v598 = vpop.f32.mrf.mxu0
        %v599 = vadd.f32 %v451, %v598
        %600 = vdwg.mxu0
        %601 = vmatpush.msra.mxu0 0.0
        %602 = vmatpush.msra.mxu0 0.0
        %603 = vmatpush.msra.mxu0 0.0
        %604 = vmatpush.msra.mxu0 0.0
        %605 = vmatpush.msra.mxu0 0.0
        %606 = vmatpush.msra.mxu0 0.0
        %607 = vmatpush.msra.mxu0 0.0
        %608 = vmatpush.msra.mxu0 0.0
        %609 = vmatpush.msra.mxu0 0.0
        %610 = vmatpush.msra.mxu0 0.0
        %611 = vmatpush.msra.mxu0 0.0
        %612 = vmatpush.msra.mxu0 0.0
        %613 = vmatpush.msra.mxu0 0.0
        %614 = vmatpush.msra.mxu0 0.0
        %615 = vmatpush.msra.mxu0 0.0
        %616 = vmatpush.msra.mxu0 %v495
        %617 = vmatmul.f32.gmra.mxu0 %v474
        %v618 = vpop.f32.mrf.mxu0
        %v619 = vadd.f32 %v431, %v618
        %620 = vmatmul.f32.gmra.mxu0 %v477
        %v621 = vpop.f32.mrf.mxu0
        %v622 = vadd.f32 %v436, %v621
        %623 = vmatmul.f32.gmra.mxu0 %v480
        %v624 = vpop.f32.mrf.mxu0
        %v625 = vadd.f32 %v441, %v624
        %626 = vmatmul.f32.gmra.mxu0 %v483
        %v627 = vpop.f32.mrf.mxu0
        %v628 = vadd.f32 %v446, %v627
        %629 = vmatmul.f32.gmra.mxu0 %v486
        %v630 = vpop.f32.mrf.mxu0
        %v631 = vadd.f32 %v451, %v630
        %632 = vdwg.mxu0
        %633 = vmatpush.msra.mxu0 0.0
        %634 = vmatpush.msra.mxu0 0.0
        %635 = vmatpush.msra.mxu0 0.0
        %636 = vmatpush.msra.mxu0 0.0
        %637 = vmatpush.msra.mxu0 0.0
        %638 = vmatpush.msra.mxu0 0.0
        %639 = vmatpush.msra.mxu0 0.0
        %640 = vmatpush.msra.mxu0 0.0
        %641 = vmatpush.msra.mxu0 0.0
        %642 = vmatpush.msra.mxu0 0.0
        %643 = vmatpush.msra.mxu0 0.0
        %644 = vmatpush.msra.mxu0 0.0
        %645 = vmatpush.msra.mxu0 0.0
        %646 = vmatpush.msra.mxu0 0.0
        %647 = vmatpush.msra.mxu0 0.0
        %648 = vmatpush.msra.mxu0 %v497
        %649 = vmatmul.f32.gmra.mxu0 %v474
        %v650 = vpop.f32.mrf.mxu0
        %v651 = vadd.f32 %v431, %v650
        %652 = vmatmul.f32.gmra.mxu0 %v477
        %v653 = vpop.f32.mrf.mxu0
        %v654 = vadd.f32 %v436, %v653
        %655 = vmatmul.f32.gmra.mxu0 %v480
        %v656 = vpop.f32.mrf.mxu0
        %v657 = vadd.f32 %v441, %v656
        %658 = vmatmul.f32.gmra.mxu0 %v483
        %v659 = vpop.f32.mrf.mxu0
        %v660 = vadd.f32 %v446, %v659
        %661 = vmatmul.f32.gmra.mxu0 %v486
        %v662 = vpop.f32.mrf.mxu0
        %v663 = vadd.f32 %v451, %v662
        %664 = vdwg.mxu0
        %665 = vmatpush.msra.mxu0 0.0
        %666 = vmatpush.msra.mxu0 0.0
        %667 = vmatpush.msra.mxu0 0.0
        %668 = vmatpush.msra.mxu0 0.0
        %669 = vmatpush.msra.mxu0 0.0
        %670 = vmatpush.msra.mxu0 0.0
        %671 = vmatpush.msra.mxu0 0.0
        %672 = vmatpush.msra.mxu0 0.0
        %673 = vmatpush.msra.mxu0 0.0
        %674 = vmatpush.msra.mxu0 0.0
        %675 = vmatpush.msra.mxu0 0.0
        %676 = vmatpush.msra.mxu0 0.0
        %677 = vmatpush.msra.mxu0 0.0
        %678 = vmatpush.msra.mxu0 0.0
        %679 = vmatpush.msra.mxu0 0.0
        %680 = vmatpush.msra.mxu0 %v499
        %681 = vmatmul.f32.gmra.mxu0 %v474
        %v682 = vpop.f32.mrf.mxu0
        %v683 = vadd.f32 %v431, %v682
        %684 = vmatmul.f32.gmra.mxu0 %v477
        %v685 = vpop.f32.mrf.mxu0
        %v686 = vadd.f32 %v436, %v685
        %687 = vmatmul.f32.gmra.mxu0 %v480
        %v688 = vpop.f32.mrf.mxu0
        %v689 = vadd.f32 %v441, %v688
        %690 = vmatmul.f32.gmra.mxu0 %v483
        %v691 = vpop.f32.mrf.mxu0
        %v692 = vadd.f32 %v446, %v691
        %693 = vmatmul.f32.gmra.mxu0 %v486
        %v694 = vpop.f32.mrf.mxu0
        %v695 = vadd.f32 %v451, %v694
        %696 = vdwg.mxu0
        %697 = vmatpush.msra.mxu0 0.0
        %698 = vmatpush.msra.mxu0 0.0
        %699 = vmatpush.msra.mxu0 0.0
        %700 = vmatpush.msra.mxu0 0.0
        %701 = vmatpush.msra.mxu0 0.0
        %702 = vmatpush.msra.mxu0 0.0
        %703 = vmatpush.msra.mxu0 0.0
        %704 = vmatpush.msra.mxu0 0.0
        %705 = vmatpush.msra.mxu0 0.0
        %706 = vmatpush.msra.mxu0 0.0
        %707 = vmatpush.msra.mxu0 0.0
        %708 = vmatpush.msra.mxu0 0.0
        %709 = vmatpush.msra.mxu0 0.0
        %710 = vmatpush.msra.mxu0 0.0
        %711 = vmatpush.msra.mxu0 0.0
        %712 = vmatpush.msra.mxu0 %v501
        %713 = vmatmul.f32.gmra.mxu0 %v474
        %v714 = vpop.f32.mrf.mxu0
        %v715 = vadd.f32 %v431, %v714
        %716 = vmatmul.f32.gmra.mxu0 %v477
        %v717 = vpop.f32.mrf.mxu0
        %v718 = vadd.f32 %v436, %v717
        %719 = vmatmul.f32.gmra.mxu0 %v480
        %v720 = vpop.f32.mrf.mxu0
        %v721 = vadd.f32 %v441, %v720
        %722 = vmatmul.f32.gmra.mxu0 %v483
        %v723 = vpop.f32.mrf.mxu0
        %v724 = vadd.f32 %v446, %v723
        %725 = vmatmul.f32.gmra.mxu0 %v486
        %v726 = vpop.f32.mrf.mxu0
        %v727 = vadd.f32 %v451, %v726
        %728 = vdwg.mxu0
        %729 = vmatpush.msra.mxu0 0.0
        %730 = vmatpush.msra.mxu0 0.0
        %731 = vmatpush.msra.mxu0 0.0
        %732 = vmatpush.msra.mxu0 0.0
        %733 = vmatpush.msra.mxu0 0.0
        %734 = vmatpush.msra.mxu0 0.0
        %735 = vmatpush.msra.mxu0 0.0
        %736 = vmatpush.msra.mxu0 0.0
        %737 = vmatpush.msra.mxu0 0.0
        %738 = vmatpush.msra.mxu0 0.0
        %739 = vmatpush.msra.mxu0 0.0
        %740 = vmatpush.msra.mxu0 0.0
        %741 = vmatpush.msra.mxu0 0.0
        %742 = vmatpush.msra.mxu0 0.0
        %743 = vmatpush.msra.mxu0 0.0
        %744 = vmatpush.msra.mxu0 %v503
        %745 = vmatmul.f32.gmra.mxu0 %v474
        %v746 = vpop.f32.mrf.mxu0
        %v747 = vadd.f32 %v431, %v746
        %748 = vmatmul.f32.gmra.mxu0 %v477
        %v749 = vpop.f32.mrf.mxu0
        %v750 = vadd.f32 %v436, %v749
        %751 = vmatmul.f32.gmra.mxu0 %v480
        %v752 = vpop.f32.mrf.mxu0
        %v753 = vadd.f32 %v441, %v752
        %754 = vmatmul.f32.gmra.mxu0 %v483
        %v755 = vpop.f32.mrf.mxu0
        %v756 = vadd.f32 %v446, %v755
        %757 = vmatmul.f32.gmra.mxu0 %v486
        %v758 = vpop.f32.mrf.mxu0
        %v759 = vadd.f32 %v451, %v758
        %760 = vdwg.mxu0
        %v761 = vmax.f32 %v523, 0.0
        %v762 = vmax.f32 %v555, 0.0
        %v763 = vmax.f32 %v587, 0.0
        %v764 = vmax.f32 %v619, 0.0
        %v765 = vmax.f32 %v651, 0.0
        %v766 = vmax.f32 %v683, 0.0
        %v767 = vmax.f32 %v715, 0.0
        %v768 = vmax.f32 %v747, 0.0
        %v769 = vmax.f32 %v526, 0.0
        %v770 = vmax.f32 %v558, 0.0
        %v771 = vmax.f32 %v590, 0.0
        %v772 = vmax.f32 %v622, 0.0
        %v773 = vmax.f32 %v654, 0.0
        %v774 = vmax.f32 %v686, 0.0
        %v775 = vmax.f32 %v718, 0.0
        %v776 = vmax.f32 %v750, 0.0
        %v777 = vmax.f32 %v529, 0.0
        %v778 = vmax.f32 %v561, 0.0
        %v779 = vmax.f32 %v593, 0.0
        %v780 = vmax.f32 %v625, 0.0
        %v781 = vmax.f32 %v657, 0.0
        %v782 = vmax.f32 %v689, 0.0
        %v783 = vmax.f32 %v721, 0.0
        %v784 = vmax.f32 %v753, 0.0
        %v785 = vmax.f32 %v532, 0.0
        %v786 = vmax.f32 %v564, 0.0
        %v787 = vmax.f32 %v596, 0.0
        %v788 = vmax.f32 %v628, 0.0
        %v789 = vmax.f32 %v660, 0.0
        %v790 = vmax.f32 %v692, 0.0
        %v791 = vmax.f32 %v724, 0.0
        %v792 = vmax.f32 %v756, 0.0
        %v793 = vmax.f32 %v535, 0.0
        %v794 = vmax.f32 %v567, 0.0
        %v795 = vmax.f32 %v599, 0.0
        %v796 = vmax.f32 %v631, 0.0
        %v797 = vmax.f32 %v663, 0.0
        %v798 = vmax.f32 %v695, 0.0
        %v799 = vmax.f32 %v727, 0.0
        %v800 = vmax.f32 %v759, 0.0
        %801 = vxpose.xlu0.b32.start [1/16] %v761, 128
        %802 = vxpose.xlu0.b32.cont [2/16] %v769, 128
        %803 = vxpose.xlu0.b32.cont [3/16] %v777, 128
        %804 = vxpose.xlu0.b32.cont [4/16] %v785, 128
        %805 = vxpose.xlu0.b32.cont [5/16] %v793, 128
        %806 = vxpose.xlu0.b32.cont [6/16] 0.0, 128
        %807 = vxpose.xlu0.b32.cont [7/16] 0.0, 128
        %808 = vxpose.xlu0.b32.cont [8/16] 0.0, 128
        %809 = vxpose.xlu0.b32.cont [9/16] 0.0, 128
        %810 = vxpose.xlu0.b32.cont [10/16] 0.0, 128
        %811 = vxpose.xlu0.b32.cont [11/16] 0.0, 128
        %812 = vxpose.xlu0.b32.cont [12/16] 0.0, 128
        %813 = vxpose.xlu0.b32.cont [13/16] 0.0, 128
        %814 = vxpose.xlu0.b32.cont [14/16] 0.0, 128
        %815 = vxpose.xlu0.b32.cont [15/16] 0.0, 128
        %816 = vxpose.xlu0.b32.end [16/16] 0.0, 128
        %v817 = vpop.trf.xlu0
        %v818 = vpop.trf.xlu0
        %v819 = vpop.trf.xlu0
        %v820 = vpop.trf.xlu0
        %v821 = vpop.trf.xlu0
        %v822 = vpop.trf.xlu0
        %v823 = vpop.trf.xlu0
        %v824 = vpop.trf.xlu0
        %v825 = vpop.trf.xlu0
        %v826 = vpop.trf.xlu0
        %v827 = vpop.trf.xlu0
        %v828 = vpop.trf.xlu0
        %v829 = vpop.trf.xlu0
        %v830 = vpop.trf.xlu0
        %v831 = vpop.trf.xlu0
        %v832 = vpop.trf.xlu0
        %833 = vxpose.xlu0.b32.start [1/16] %v762, 128
        %834 = vxpose.xlu0.b32.cont [2/16] %v770, 128
        %835 = vxpose.xlu0.b32.cont [3/16] %v778, 128
        %836 = vxpose.xlu0.b32.cont [4/16] %v786, 128
        %837 = vxpose.xlu0.b32.cont [5/16] %v794, 128
        %838 = vxpose.xlu0.b32.cont [6/16] 0.0, 128
        %839 = vxpose.xlu0.b32.cont [7/16] 0.0, 128
        %840 = vxpose.xlu0.b32.cont [8/16] 0.0, 128
        %841 = vxpose.xlu0.b32.cont [9/16] 0.0, 128
        %842 = vxpose.xlu0.b32.cont [10/16] 0.0, 128
        %843 = vxpose.xlu0.b32.cont [11/16] 0.0, 128
        %844 = vxpose.xlu0.b32.cont [12/16] 0.0, 128
        %845 = vxpose.xlu0.b32.cont [13/16] 0.0, 128
        %846 = vxpose.xlu0.b32.cont [14/16] 0.0, 128
        %847 = vxpose.xlu0.b32.cont [15/16] 0.0, 128
        %848 = vxpose.xlu0.b32.end [16/16] 0.0, 128
        %v849 = vpop.trf.xlu0
        %v850 = vpop.trf.xlu0
        %v851 = vpop.trf.xlu0
        %v852 = vpop.trf.xlu0
        %v853 = vpop.trf.xlu0
        %v854 = vpop.trf.xlu0
        %v855 = vpop.trf.xlu0
        %v856 = vpop.trf.xlu0
        %v857 = vpop.trf.xlu0
        %v858 = vpop.trf.xlu0
        %v859 = vpop.trf.xlu0
        %v860 = vpop.trf.xlu0
        %v861 = vpop.trf.xlu0
        %v862 = vpop.trf.xlu0
        %v863 = vpop.trf.xlu0
        %v864 = vpop.trf.xlu0
        %865 = vxpose.xlu0.b32.start [1/16] %v763, 128
        %866 = vxpose.xlu0.b32.cont [2/16] %v771, 128
        %867 = vxpose.xlu0.b32.cont [3/16] %v779, 128
        %868 = vxpose.xlu0.b32.cont [4/16] %v787, 128
        %869 = vxpose.xlu0.b32.cont [5/16] %v795, 128
        %870 = vxpose.xlu0.b32.cont [6/16] 0.0, 128
        %871 = vxpose.xlu0.b32.cont [7/16] 0.0, 128
        %872 = vxpose.xlu0.b32.cont [8/16] 0.0, 128
        %873 = vxpose.xlu0.b32.cont [9/16] 0.0, 128
        %874 = vxpose.xlu0.b32.cont [10/16] 0.0, 128
        %875 = vxpose.xlu0.b32.cont [11/16] 0.0, 128
        %876 = vxpose.xlu0.b32.cont [12/16] 0.0, 128
        %877 = vxpose.xlu0.b32.cont [13/16] 0.0, 128
        %878 = vxpose.xlu0.b32.cont [14/16] 0.0, 128
        %879 = vxpose.xlu0.b32.cont [15/16] 0.0, 128
        %880 = vxpose.xlu0.b32.end [16/16] 0.0, 128
        %v881 = vpop.trf.xlu0
        %v882 = vpop.trf.xlu0
        %v883 = vpop.trf.xlu0
        %v884 = vpop.trf.xlu0
        %v885 = vpop.trf.xlu0
        %v886 = vpop.trf.xlu0
        %v887 = vpop.trf.xlu0
        %v888 = vpop.trf.xlu0
        %v889 = vpop.trf.xlu0
        %v890 = vpop.trf.xlu0
        %v891 = vpop.trf.xlu0
        %v892 = vpop.trf.xlu0
        %v893 = vpop.trf.xlu0
        %v894 = vpop.trf.xlu0
        %v895 = vpop.trf.xlu0
        %v896 = vpop.trf.xlu0
        %897 = vxpose.xlu0.b32.start [1/16] %v764, 128
        %898 = vxpose.xlu0.b32.cont [2/16] %v772, 128
        %899 = vxpose.xlu0.b32.cont [3/16] %v780, 128
        %900 = vxpose.xlu0.b32.cont [4/16] %v788, 128
        %901 = vxpose.xlu0.b32.cont [5/16] %v796, 128
        %902 = vxpose.xlu0.b32.cont [6/16] 0.0, 128
        %903 = vxpose.xlu0.b32.cont [7/16] 0.0, 128
        %904 = vxpose.xlu0.b32.cont [8/16] 0.0, 128
        %905 = vxpose.xlu0.b32.cont [9/16] 0.0, 128
        %906 = vxpose.xlu0.b32.cont [10/16] 0.0, 128
        %907 = vxpose.xlu0.b32.cont [11/16] 0.0, 128
        %908 = vxpose.xlu0.b32.cont [12/16] 0.0, 128
        %909 = vxpose.xlu0.b32.cont [13/16] 0.0, 128
        %910 = vxpose.xlu0.b32.cont [14/16] 0.0, 128
        %911 = vxpose.xlu0.b32.cont [15/16] 0.0, 128
        %912 = vxpose.xlu0.b32.end [16/16] 0.0, 128
        %v913 = vpop.trf.xlu0
        %v914 = vpop.trf.xlu0
        %v915 = vpop.trf.xlu0
        %v916 = vpop.trf.xlu0
        %v917 = vpop.trf.xlu0
        %v918 = vpop.trf.xlu0
        %v919 = vpop.trf.xlu0
        %v920 = vpop.trf.xlu0
        %v921 = vpop.trf.xlu0
        %v922 = vpop.trf.xlu0
        %v923 = vpop.trf.xlu0
        %v924 = vpop.trf.xlu0
        %v925 = vpop.trf.xlu0
        %v926 = vpop.trf.xlu0
        %v927 = vpop.trf.xlu0
        %v928 = vpop.trf.xlu0
        %929 = vxpose.xlu0.b32.start [1/16] %v765, 128
        %930 = vxpose.xlu0.b32.cont [2/16] %v773, 128
        %931 = vxpose.xlu0.b32.cont [3/16] %v781, 128
        %932 = vxpose.xlu0.b32.cont [4/16] %v789, 128
        %933 = vxpose.xlu0.b32.cont [5/16] %v797, 128
        %934 = vxpose.xlu0.b32.cont [6/16] 0.0, 128
        %935 = vxpose.xlu0.b32.cont [7/16] 0.0, 128
        %936 = vxpose.xlu0.b32.cont [8/16] 0.0, 128
        %937 = vxpose.xlu0.b32.cont [9/16] 0.0, 128
        %938 = vxpose.xlu0.b32.cont [10/16] 0.0, 128
        %939 = vxpose.xlu0.b32.cont [11/16] 0.0, 128
        %940 = vxpose.xlu0.b32.cont [12/16] 0.0, 128
        %941 = vxpose.xlu0.b32.cont [13/16] 0.0, 128
        %942 = vxpose.xlu0.b32.cont [14/16] 0.0, 128
        %943 = vxpose.xlu0.b32.cont [15/16] 0.0, 128
        %944 = vxpose.xlu0.b32.end [16/16] 0.0, 128
        %v945 = vpop.trf.xlu0
        %v946 = vpop.trf.xlu0
        %v947 = vpop.trf.xlu0
        %v948 = vpop.trf.xlu0
        %v949 = vpop.trf.xlu0
        %v950 = vpop.trf.xlu0
        %v951 = vpop.trf.xlu0
        %v952 = vpop.trf.xlu0
        %v953 = vpop.trf.xlu0
        %v954 = vpop.trf.xlu0
        %v955 = vpop.trf.xlu0
        %v956 = vpop.trf.xlu0
        %v957 = vpop.trf.xlu0
        %v958 = vpop.trf.xlu0
        %v959 = vpop.trf.xlu0
        %v960 = vpop.trf.xlu0
        %961 = vxpose.xlu0.b32.start [1/16] %v766, 128
        %962 = vxpose.xlu0.b32.cont [2/16] %v774, 128
        %963 = vxpose.xlu0.b32.cont [3/16] %v782, 128
        %964 = vxpose.xlu0.b32.cont [4/16] %v790, 128
        %965 = vxpose.xlu0.b32.cont [5/16] %v798, 128
        %966 = vxpose.xlu0.b32.cont [6/16] 0.0, 128
        %967 = vxpose.xlu0.b32.cont [7/16] 0.0, 128
        %968 = vxpose.xlu0.b32.cont [8/16] 0.0, 128
        %969 = vxpose.xlu0.b32.cont [9/16] 0.0, 128
        %970 = vxpose.xlu0.b32.cont [10/16] 0.0, 128
        %971 = vxpose.xlu0.b32.cont [11/16] 0.0, 128
        %972 = vxpose.xlu0.b32.cont [12/16] 0.0, 128
        %973 = vxpose.xlu0.b32.cont [13/16] 0.0, 128
        %974 = vxpose.xlu0.b32.cont [14/16] 0.0, 128
        %975 = vxpose.xlu0.b32.cont [15/16] 0.0, 128
        %976 = vxpose.xlu0.b32.end [16/16] 0.0, 128
        %v977 = vpop.trf.xlu0
        %v978 = vpop.trf.xlu0
        %v979 = vpop.trf.xlu0
        %v980 = vpop.trf.xlu0
        %v981 = vpop.trf.xlu0
        %v982 = vpop.trf.xlu0
        %v983 = vpop.trf.xlu0
        %v984 = vpop.trf.xlu0
        %v985 = vpop.trf.xlu0
        %v986 = vpop.trf.xlu0
        %v987 = vpop.trf.xlu0
        %v988 = vpop.trf.xlu0
        %v989 = vpop.trf.xlu0
        %v990 = vpop.trf.xlu0
        %v991 = vpop.trf.xlu0
        %v992 = vpop.trf.xlu0
        %993 = vxpose.xlu0.b32.start [1/16] %v767, 128
        %994 = vxpose.xlu0.b32.cont [2/16] %v775, 128
        %995 = vxpose.xlu0.b32.cont [3/16] %v783, 128
        %996 = vxpose.xlu0.b32.cont [4/16] %v791, 128
        %997 = vxpose.xlu0.b32.cont [5/16] %v799, 128
        %998 = vxpose.xlu0.b32.cont [6/16] 0.0, 128
        %999 = vxpose.xlu0.b32.cont [7/16] 0.0, 128
        %1000 = vxpose.xlu0.b32.cont [8/16] 0.0, 128
        %1001 = vxpose.xlu0.b32.cont [9/16] 0.0, 128
        %1002 = vxpose.xlu0.b32.cont [10/16] 0.0, 128
        %1003 = vxpose.xlu0.b32.cont [11/16] 0.0, 128
        %1004 = vxpose.xlu0.b32.cont [12/16] 0.0, 128
        %1005 = vxpose.xlu0.b32.cont [13/16] 0.0, 128
        %1006 = vxpose.xlu0.b32.cont [14/16] 0.0, 128
        %1007 = vxpose.xlu0.b32.cont [15/16] 0.0, 128
        %1008 = vxpose.xlu0.b32.end [16/16] 0.0, 128
        %v1009 = vpop.trf.xlu0
        %v1010 = vpop.trf.xlu0
        %v1011 = vpop.trf.xlu0
        %v1012 = vpop.trf.xlu0
        %v1013 = vpop.trf.xlu0
        %v1014 = vpop.trf.xlu0
        %v1015 = vpop.trf.xlu0
        %v1016 = vpop.trf.xlu0
        %v1017 = vpop.trf.xlu0
        %v1018 = vpop.trf.xlu0
        %v1019 = vpop.trf.xlu0
        %v1020 = vpop.trf.xlu0
        %v1021 = vpop.trf.xlu0
        %v1022 = vpop.trf.xlu0
        %v1023 = vpop.trf.xlu0
        %v1024 = vpop.trf.xlu0
        %1025 = vxpose.xlu0.b32.start [1/16] %v768, 128
        %1026 = vxpose.xlu0.b32.cont [2/16] %v776, 128
        %1027 = vxpose.xlu0.b32.cont [3/16] %v784, 128
        %1028 = vxpose.xlu0.b32.cont [4/16] %v792, 128
        %1029 = vxpose.xlu0.b32.cont [5/16] %v800, 128
        %1030 = vxpose.xlu0.b32.cont [6/16] 0.0, 128
        %1031 = vxpose.xlu0.b32.cont [7/16] 0.0, 128
        %1032 = vxpose.xlu0.b32.cont [8/16] 0.0, 128
        %1033 = vxpose.xlu0.b32.cont [9/16] 0.0, 128
        %1034 = vxpose.xlu0.b32.cont [10/16] 0.0, 128
        %1035 = vxpose.xlu0.b32.cont [11/16] 0.0, 128
        %1036 = vxpose.xlu0.b32.cont [12/16] 0.0, 128
        %1037 = vxpose.xlu0.b32.cont [13/16] 0.0, 128
        %1038 = vxpose.xlu0.b32.cont [14/16] 0.0, 128
        %1039 = vxpose.xlu0.b32.cont [15/16] 0.0, 128
        %1040 = vxpose.xlu0.b32.end [16/16] 0.0, 128
        %v1041 = vpop.trf.xlu0
        %v1042 = vpop.trf.xlu0
        %v1043 = vpop.trf.xlu0
        %v1044 = vpop.trf.xlu0
        %v1045 = vpop.trf.xlu0
        %v1046 = vpop.trf.xlu0
        %v1047 = vpop.trf.xlu0
        %v1048 = vpop.trf.xlu0
        %v1049 = vpop.trf.xlu0
        %v1050 = vpop.trf.xlu0
        %v1051 = vpop.trf.xlu0
        %v1052 = vpop.trf.xlu0
        %v1053 = vpop.trf.xlu0
        %v1054 = vpop.trf.xlu0
        %v1055 = vpop.trf.xlu0
        %v1056 = vpop.trf.xlu0
        %v1057 = vmax.f32 %v817, %v821
        %v1058 = vmax.f32 %v818, %v822
        %v1059 = vmax.f32 %v819, %v823
        %v1060 = vmax.f32 %v820, %v824
        %v1061 = vmax.f32 %v849, %v853
        %v1062 = vmax.f32 %v850, %v854
        %v1063 = vmax.f32 %v851, %v855
        %v1064 = vmax.f32 %v852, %v856
        %v1065 = vmax.f32 %v881, %v885
        %v1066 = vmax.f32 %v882, %v886
        %v1067 = vmax.f32 %v883, %v887
        %v1068 = vmax.f32 %v884, %v888
        %v1069 = vmax.f32 %v913, %v917
        %v1070 = vmax.f32 %v914, %v918
        %v1071 = vmax.f32 %v915, %v919
        %v1072 = vmax.f32 %v916, %v920
        %v1073 = vmax.f32 %v945, %v949
        %v1074 = vmax.f32 %v946, %v950
        %v1075 = vmax.f32 %v947, %v951
        %v1076 = vmax.f32 %v948, %v952
        %v1077 = vmax.f32 %v977, %v981
        %v1078 = vmax.f32 %v978, %v982
        %v1079 = vmax.f32 %v979, %v983
        %v1080 = vmax.f32 %v980, %v984
        %v1081 = vmax.f32 %v1009, %v1013
        %v1082 = vmax.f32 %v1010, %v1014
        %v1083 = vmax.f32 %v1011, %v1015
        %v1084 = vmax.f32 %v1012, %v1016
        %v1085 = vmax.f32 %v1041, %v1045
        %v1086 = vmax.f32 %v1042, %v1046
        %v1087 = vmax.f32 %v1043, %v1047
        %v1088 = vmax.f32 %v1044, %v1048
        %v1089 = vmax.f32 %v1057, %v825
        %v1090 = vmax.f32 %v1058, %v826
        %v1091 = vmax.f32 %v1059, %v827
        %v1092 = vmax.f32 %v1060, %v828
        %v1093 = vmax.f32 %v1061, %v857
        %v1094 = vmax.f32 %v1062, %v858
        %v1095 = vmax.f32 %v1063, %v859
        %v1096 = vmax.f32 %v1064, %v860
        %v1097 = vmax.f32 %v1065, %v889
        %v1098 = vmax.f32 %v1066, %v890
        %v1099 = vmax.f32 %v1067, %v891
        %v1100 = vmax.f32 %v1068, %v892
        %v1101 = vmax.f32 %v1069, %v921
        %v1102 = vmax.f32 %v1070, %v922
        %v1103 = vmax.f32 %v1071, %v923
        %v1104 = vmax.f32 %v1072, %v924
        %v1105 = vmax.f32 %v1073, %v953
        %v1106 = vmax.f32 %v1074, %v954
        %v1107 = vmax.f32 %v1075, %v955
        %v1108 = vmax.f32 %v1076, %v956
        %v1109 = vmax.f32 %v1077, %v985
        %v1110 = vmax.f32 %v1078, %v986
        %v1111 = vmax.f32 %v1079, %v987
        %v1112 = vmax.f32 %v1080, %v988
        %v1113 = vmax.f32 %v1081, %v1017
        %v1114 = vmax.f32 %v1082, %v1018
        %v1115 = vmax.f32 %v1083, %v1019
        %v1116 = vmax.f32 %v1084, %v1020
        %v1117 = vmax.f32 %v1085, %v1049
        %v1118 = vmax.f32 %v1086, %v1050
        %v1119 = vmax.f32 %v1087, %v1051
        %v1120 = vmax.f32 %v1088, %v1052
        %v1121 = vmax.f32 %v1089, %v829
        %v1122 = vmax.f32 %v1090, %v830
        %v1123 = vmax.f32 %v1091, %v831
        %v1124 = vmax.f32 %v1092, %v832
        %v1125 = vmax.f32 %v1093, %v861
        %v1126 = vmax.f32 %v1094, %v862
        %v1127 = vmax.f32 %v1095, %v863
        %v1128 = vmax.f32 %v1096, %v864
        %v1129 = vmax.f32 %v1097, %v893
        %v1130 = vmax.f32 %v1098, %v894
        %v1131 = vmax.f32 %v1099, %v895
        %v1132 = vmax.f32 %v1100, %v896
        %v1133 = vmax.f32 %v1101, %v925
        %v1134 = vmax.f32 %v1102, %v926
        %v1135 = vmax.f32 %v1103, %v927
        %v1136 = vmax.f32 %v1104, %v928
        %v1137 = vmax.f32 %v1105, %v957
        %v1138 = vmax.f32 %v1106, %v958
        %v1139 = vmax.f32 %v1107, %v959
        %v1140 = vmax.f32 %v1108, %v960
        %v1141 = vmax.f32 %v1109, %v989
        %v1142 = vmax.f32 %v1110, %v990
        %v1143 = vmax.f32 %v1111, %v991
        %v1144 = vmax.f32 %v1112, %v992
        %v1145 = vmax.f32 %v1113, %v1021
        %v1146 = vmax.f32 %v1114, %v1022
        %v1147 = vmax.f32 %v1115, %v1023
        %v1148 = vmax.f32 %v1116, %v1024
        %v1149 = vmax.f32 %v1117, %v1053
        %v1150 = vmax.f32 %v1118, %v1054
        %v1151 = vmax.f32 %v1119, %v1055
        %v1152 = vmax.f32 %v1120, %v1056
        %vm1153 = vcmask 326656
        %1154 = vst.msk [vmem:[#allocation2] sm:$0xff] %vm1153, %v1121
        %1155 = vst.msk [vmem:[#allocation2 + $0x8] sm:$0xff] %vm1153, %v1122
        %1156 = vst.msk [vmem:[#allocation2 + $0x10] sm:$0xff] %vm1153, %v1123
        %1157 = vst.msk [vmem:[#allocation2 + $0x18] sm:$0xff] %vm1153, %v1124
        %1158 = vst.msk [vmem:[#allocation2 + $0x20] sm:$0xff] %vm1153, %v1125
        %1159 = vst.msk [vmem:[#allocation2 + $0x28] sm:$0xff] %vm1153, %v1126
        %1160 = vst.msk [vmem:[#allocation2 + $0x30] sm:$0xff] %vm1153, %v1127
        %1161 = vst.msk [vmem:[#allocation2 + $0x38] sm:$0xff] %vm1153, %v1128
        %1162 = vst.msk [vmem:[#allocation2 + $0x40] sm:$0xff] %vm1153, %v1129
        %1163 = vst.msk [vmem:[#allocation2 + $0x48] sm:$0xff] %vm1153, %v1130
        %1164 = vst.msk [vmem:[#allocation2 + $0x50] sm:$0xff] %vm1153, %v1131
        %1165 = vst.msk [vmem:[#allocation2 + $0x58] sm:$0xff] %vm1153, %v1132
        %1166 = vst.msk [vmem:[#allocation2 + $0x60] sm:$0xff] %vm1153, %v1133
        %1167 = vst.msk [vmem:[#allocation2 + $0x68] sm:$0xff] %vm1153, %v1134
        %1168 = vst.msk [vmem:[#allocation2 + $0x70] sm:$0xff] %vm1153, %v1135
        %1169 = vst.msk [vmem:[#allocation2 + $0x78] sm:$0xff] %vm1153, %v1136
        %1170 = vst.msk [vmem:[#allocation2 + $0x80] sm:$0xff] %vm1153, %v1137
        %1171 = vst.msk [vmem:[#allocation2 + $0x88] sm:$0xff] %vm1153, %v1138
        %1172 = vst.msk [vmem:[#allocation2 + $0x90] sm:$0xff] %vm1153, %v1139
        %1173 = vst.msk [vmem:[#allocation2 + $0x98] sm:$0xff] %vm1153, %v1140
        %1174 = vst.msk [vmem:[#allocation2 + $0xa0] sm:$0xff] %vm1153, %v1141
        %1175 = vst.msk [vmem:[#allocation2 + $0xa8] sm:$0xff] %vm1153, %v1142
        %1176 = vst.msk [vmem:[#allocation2 + $0xb0] sm:$0xff] %vm1153, %v1143
        %1177 = vst.msk [vmem:[#allocation2 + $0xb8] sm:$0xff] %vm1153, %v1144
        %1178 = vst.msk [vmem:[#allocation2 + $0xc0] sm:$0xff] %vm1153, %v1145
        %1179 = vst.msk [vmem:[#allocation2 + $0xc8] sm:$0xff] %vm1153, %v1146
        %1180 = vst.msk [vmem:[#allocation2 + $0xd0] sm:$0xff] %vm1153, %v1147
        %1181 = vst.msk [vmem:[#allocation2 + $0xd8] sm:$0xff] %vm1153, %v1148
        %1182 = vst.msk [vmem:[#allocation2 + $0xe0] sm:$0xff] %vm1153, %v1149
        %1183 = vst.msk [vmem:[#allocation2 + $0xe8] sm:$0xff] %vm1153, %v1150
        %1184 = vst.msk [vmem:[#allocation2 + $0xf0] sm:$0xff] %vm1153, %v1151
        %1185 = vst.msk [vmem:[#allocation2 + $0xf8] sm:$0xff] %vm1153, %v1152
        %v1186 = vld [vmem:[#allocation2] ss:$4 sm:$0xff]
        %s1187 = scalar_lea.vmem [#allocation2], 32
        %v1188 = vld [vmem:[%s1187] ss:$4 sm:$0xff]
        %s1189 = scalar_lea.vmem [#allocation2], 64
        %v1190 = vld [vmem:[%s1189] ss:$4 sm:$0xff]
        %s1191 = scalar_lea.vmem [#allocation2], 96
        %v1192 = vld [vmem:[%s1191] ss:$4 sm:$0xff]
        %s1193 = scalar_lea.vmem [#allocation2], 128
        %v1194 = vld [vmem:[%s1193] ss:$4 sm:$0xff]
        %s1195 = scalar_lea.vmem [#allocation2], 160
        %v1196 = vld [vmem:[%s1195] ss:$4 sm:$0xff]
        %s1197 = scalar_lea.vmem [#allocation2], 192
        %v1198 = vld [vmem:[%s1197] ss:$4 sm:$0xff]
        %s1199 = scalar_lea.vmem [#allocation2], 224
        %v1200 = vld [vmem:[%s1199] ss:$4 sm:$0xff]
        %s1201 = scalar_lea.vmem [#allocation2], 1
        %v1202 = vld [vmem:[%s1201] ss:$4 sm:$0xff]
        %s1203 = scalar_lea.vmem [#allocation2], 33
        %v1204 = vld [vmem:[%s1203] ss:$4 sm:$0xff]
        %s1205 = scalar_lea.vmem [#allocation2], 65
        %v1206 = vld [vmem:[%s1205] ss:$4 sm:$0xff]
        %s1207 = scalar_lea.vmem [#allocation2], 97
        %v1208 = vld [vmem:[%s1207] ss:$4 sm:$0xff]
        %s1209 = scalar_lea.vmem [#allocation2], 129
        %v1210 = vld [vmem:[%s1209] ss:$4 sm:$0xff]
        %s1211 = scalar_lea.vmem [#allocation2], 161
        %v1212 = vld [vmem:[%s1211] ss:$4 sm:$0xff]
        %s1213 = scalar_lea.vmem [#allocation2], 193
        %v1214 = vld [vmem:[%s1213] ss:$4 sm:$0xff]
        %s1215 = scalar_lea.vmem [#allocation2], 225
        %v1216 = vld [vmem:[%s1215] ss:$4 sm:$0xff]
        %v1217 = vmax.f32 %v1186, %v1202
        %v1218 = vmax.f32 %v1188, %v1204
        %v1219 = vmax.f32 %v1190, %v1206
        %v1220 = vmax.f32 %v1192, %v1208
        %v1221 = vmax.f32 %v1194, %v1210
        %v1222 = vmax.f32 %v1196, %v1212
        %v1223 = vmax.f32 %v1198, %v1214
        %v1224 = vmax.f32 %v1200, %v1216
        %s1225 = scalar_lea.vmem [#allocation2], 2
        %v1226 = vld [vmem:[%s1225] ss:$4 sm:$0xff]
        %s1227 = scalar_lea.vmem [#allocation2], 34
        %v1228 = vld [vmem:[%s1227] ss:$4 sm:$0xff]
        %s1229 = scalar_lea.vmem [#allocation2], 66
        %v1230 = vld [vmem:[%s1229] ss:$4 sm:$0xff]
        %s1231 = scalar_lea.vmem [#allocation2], 98
        %v1232 = vld [vmem:[%s1231] ss:$4 sm:$0xff]
        %s1233 = scalar_lea.vmem [#allocation2], 130
        %v1234 = vld [vmem:[%s1233] ss:$4 sm:$0xff]
        %s1235 = scalar_lea.vmem [#allocation2], 162
        %v1236 = vld [vmem:[%s1235] ss:$4 sm:$0xff]
        %s1237 = scalar_lea.vmem [#allocation2], 194
        %v1238 = vld [vmem:[%s1237] ss:$4 sm:$0xff]
        %s1239 = scalar_lea.vmem [#allocation2], 226
        %v1240 = vld [vmem:[%s1239] ss:$4 sm:$0xff]
        %v1241 = vmax.f32 %v1217, %v1226
        %v1242 = vmax.f32 %v1218, %v1228
        %v1243 = vmax.f32 %v1219, %v1230
        %v1244 = vmax.f32 %v1220, %v1232
        %v1245 = vmax.f32 %v1221, %v1234
        %v1246 = vmax.f32 %v1222, %v1236
        %v1247 = vmax.f32 %v1223, %v1238
        %v1248 = vmax.f32 %v1224, %v1240
        %s1249 = scalar_lea.vmem [#allocation2], 3
        %v1250 = vld [vmem:[%s1249] ss:$4 sm:$0xff]
        %s1251 = scalar_lea.vmem [#allocation2], 35
        %v1252 = vld [vmem:[%s1251] ss:$4 sm:$0xff]
        %s1253 = scalar_lea.vmem [#allocation2], 67
        %v1254 = vld [vmem:[%s1253] ss:$4 sm:$0xff]
        %s1255 = scalar_lea.vmem [#allocation2], 99
        %v1256 = vld [vmem:[%s1255] ss:$4 sm:$0xff]
        %s1257 = scalar_lea.vmem [#allocation2], 131
        %v1258 = vld [vmem:[%s1257] ss:$4 sm:$0xff]
        %s1259 = scalar_lea.vmem [#allocation2], 163
        %v1260 = vld [vmem:[%s1259] ss:$4 sm:$0xff]
        %s1261 = scalar_lea.vmem [#allocation2], 195
        %v1262 = vld [vmem:[%s1261] ss:$4 sm:$0xff]
        %s1263 = scalar_lea.vmem [#allocation2], 227
        %v1264 = vld [vmem:[%s1263] ss:$4 sm:$0xff]
        %v1265 = vmax.f32 %v1241, %v1250
        %v1266 = vmax.f32 %v1242, %v1252
        %v1267 = vmax.f32 %v1243, %v1254
        %v1268 = vmax.f32 %v1244, %v1256
        %v1269 = vmax.f32 %v1245, %v1258
        %v1270 = vmax.f32 %v1246, %v1260
        %v1271 = vmax.f32 %v1247, %v1262
        %v1272 = vmax.f32 %v1248, %v1264
        %v1273 = vld [vmem:[%s3] sm:$0xff]
        %v1274 = vld [vmem:[%s3 + $0x8] sm:$0xff]
        %v1275 = vld [vmem:[%s3 + $0x10] sm:$0xff]
        %v1276 = vld [vmem:[%s3 + $0x18] sm:$0xff]
        %v1277 = vld [vmem:[%s3 + $0x20] sm:$0xff]
        %v1278 = vld [vmem:[%s4] sm:$0x1]
        %v1280 = vperm.slane %v1278, 0
        %v1283 = vsel %vm1153, %v1265, 0
        %v1286 = vsel %vm1153, %v1266, 0
        %v1289 = vsel %vm1153, %v1267, 0
        %v1292 = vsel %vm1153, %v1268, 0
        %v1295 = vsel %vm1153, %v1269, 0
        %v1298 = vsel %vm1153, %v1270, 0
        %v1301 = vsel %vm1153, %v1271, 0
        %v1304 = vsel %vm1153, %v1272, 0
        %1306 = vmatpush.msra.mxu0 0.0
        %1307 = vmatpush.msra.mxu0 0.0
        %1308 = vmatpush.msra.mxu0 0.0
        %1309 = vmatpush.msra.mxu0 0.0
        %1310 = vmatpush.msra.mxu0 0.0
        %1311 = vmatpush.msra.mxu0 0.0
        %1312 = vmatpush.msra.mxu0 0.0
        %1313 = vmatpush.msra.mxu0 0.0
        %1314 = vmatpush.msra.mxu0 0.0
        %1315 = vmatpush.msra.mxu0 0.0
        %1316 = vmatpush.msra.mxu0 0.0
        %1317 = vmatpush.msra.mxu0 %v1277
        %1318 = vmatpush.msra.mxu0 %v1276
        %1319 = vmatpush.msra.mxu0 %v1275
        %1320 = vmatpush.msra.mxu0 %v1274
        %1321 = vmatpush.msra.mxu0 %v1273
        %1322 = vmatmul.f32.gmra.mxu0 %v1283
        %v1323 = vpop.f32.mrf.mxu0
        %v1324 = vadd.f32 %v1280, %v1323
        %1325 = vmatmul.f32.gmra.mxu0 %v1286
        %v1326 = vpop.f32.mrf.mxu0
        %v1327 = vadd.f32 %v1280, %v1326
        %1328 = vmatmul.f32.gmra.mxu0 %v1289
        %v1329 = vpop.f32.mrf.mxu0
        %v1330 = vadd.f32 %v1280, %v1329
        %1331 = vmatmul.f32.gmra.mxu0 %v1292
        %v1332 = vpop.f32.mrf.mxu0
        %v1333 = vadd.f32 %v1280, %v1332
        %1334 = vmatmul.f32.gmra.mxu0 %v1295
        %v1335 = vpop.f32.mrf.mxu0
        %v1336 = vadd.f32 %v1280, %v1335
        %1337 = vmatmul.f32.gmra.mxu0 %v1298
        %v1338 = vpop.f32.mrf.mxu0
        %v1339 = vadd.f32 %v1280, %v1338
        %1340 = vmatmul.f32.gmra.mxu0 %v1301
        %v1341 = vpop.f32.mrf.mxu0
        %v1342 = vadd.f32 %v1280, %v1341
        %1343 = vmatmul.f32.gmra.mxu0 %v1304
        %v1344 = vpop.f32.mrf.mxu0
        %v1345 = vadd.f32 %v1280, %v1344
        %1346 = vdwg.mxu0
        %v1347 = vmax.f32 %v1324, 0.0
        %v1348 = vmax.f32 %v1327, 0.0
        %v1349 = vmax.f32 %v1330, 0.0
        %v1350 = vmax.f32 %v1333, 0.0
        %v1351 = vmax.f32 %v1336, 0.0
        %v1352 = vmax.f32 %v1339, 0.0
        %v1353 = vmax.f32 %v1342, 0.0
        %v1354 = vmax.f32 %v1345, 0.0
        %v1355 = vld [vmem:[%s5] sm:$0xff]
        %v1356 = vld [vmem:[%s5 + $0x8] sm:$0xff]
        %v1357 = vld [vmem:[%s5 + $0x10] sm:$0xff]
        %v1358 = vld [vmem:[%s5 + $0x18] sm:$0xff]
        %v1359 = vld [vmem:[%s5 + $0x20] sm:$0xff]
        %v1360 = vld [vmem:[%s5 + $0x28] sm:$0xff]
        %v1361 = vld [vmem:[%s5 + $0x30] sm:$0xff]
        %v1362 = vld [vmem:[%s6] sm:$0x1]
        %v1364 = vperm.slane %v1362, 0
        %vm1366 = vcmask 457728
        %v1368 = vsel %vm1366, %v1347, 0
        %v1371 = vsel %vm1366, %v1348, 0
        %v1374 = vsel %vm1366, %v1349, 0
        %v1377 = vsel %vm1366, %v1350, 0
        %v1380 = vsel %vm1366, %v1351, 0
        %v1383 = vsel %vm1366, %v1352, 0
        %v1386 = vsel %vm1366, %v1353, 0
        %v1389 = vsel %vm1366, %v1354, 0
        %1391 = vmatpush.msra.mxu0 0.0
        %1392 = vmatpush.msra.mxu0 0.0
        %1393 = vmatpush.msra.mxu0 0.0
        %1394 = vmatpush.msra.mxu0 0.0
        %1395 = vmatpush.msra.mxu0 0.0
        %1396 = vmatpush.msra.mxu0 0.0
        %1397 = vmatpush.msra.mxu0 0.0
        %1398 = vmatpush.msra.mxu0 0.0
        %1399 = vmatpush.msra.mxu0 0.0
        %1400 = vmatpush.msra.mxu0 %v1361
        %1401 = vmatpush.msra.mxu0 %v1360
        %1402 = vmatpush.msra.mxu0 %v1359
        %1403 = vmatpush.msra.mxu0 %v1358
        %1404 = vmatpush.msra.mxu0 %v1357
        %1405 = vmatpush.msra.mxu0 %v1356
        %1406 = vmatpush.msra.mxu0 %v1355
        %1407 = vmatmul.f32.gmra.mxu0 %v1368
        %v1408 = vpop.f32.mrf.mxu0
        %v1409 = vadd.f32 %v1364, %v1408
        %1410 = vmatmul.f32.gmra.mxu0 %v1371
        %v1411 = vpop.f32.mrf.mxu0
        %v1412 = vadd.f32 %v1364, %v1411
        %1413 = vmatmul.f32.gmra.mxu0 %v1374
        %v1414 = vpop.f32.mrf.mxu0
        %v1415 = vadd.f32 %v1364, %v1414
        %1416 = vmatmul.f32.gmra.mxu0 %v1377
        %v1417 = vpop.f32.mrf.mxu0
        %v1418 = vadd.f32 %v1364, %v1417
        %1419 = vmatmul.f32.gmra.mxu0 %v1380
        %v1420 = vpop.f32.mrf.mxu0
        %v1421 = vadd.f32 %v1364, %v1420
        %1422 = vmatmul.f32.gmra.mxu0 %v1383
        %v1423 = vpop.f32.mrf.mxu0
        %v1424 = vadd.f32 %v1364, %v1423
        %1425 = vmatmul.f32.gmra.mxu0 %v1386
        %v1426 = vpop.f32.mrf.mxu0
        %v1427 = vadd.f32 %v1364, %v1426
        %1428 = vmatmul.f32.gmra.mxu0 %v1389
        %v1429 = vpop.f32.mrf.mxu0
        %v1430 = vadd.f32 %v1364, %v1429
        %1431 = vdwg.mxu0
        %v1432 = vmax.f32 %v1409, 0.0
        %v1433 = vmax.f32 %v1412, 0.0
        %v1434 = vmax.f32 %v1415, 0.0
        %v1435 = vmax.f32 %v1418, 0.0
        %v1436 = vmax.f32 %v1421, 0.0
        %v1437 = vmax.f32 %v1424, 0.0
        %v1438 = vmax.f32 %v1427, 0.0
        %v1439 = vmax.f32 %v1430, 0.0
        %v1440 = vmax.f32 %v1432, %v1433
        %v1441 = vmax.f32 %v1434, %v1435
        %v1442 = vmax.f32 %v1436, %v1437
        %v1443 = vmax.f32 %v1438, %v1439
        %vm1444 = vcmask 261120
        %1445 = vst.msk [vmem:[#allocation3] sm:$0xff] %vm1444, %v1440
        %1446 = vst.msk [vmem:[#allocation3 + $0x8] sm:$0xff] %vm1444, %v1441
        %1447 = vst.msk [vmem:[#allocation3 + $0x10] sm:$0xff] %vm1444, %v1442
        %1448 = vst.msk [vmem:[#allocation3 + $0x18] sm:$0xff] %vm1444, %v1443
        %v1449 = vld [vmem:[#allocation3] ss:$2 sm:$0xff]
        %s1450 = scalar_lea.vmem [#allocation3], 16
        %v1451 = vld [vmem:[%s1450] ss:$2 sm:$0xff]
        %s1452 = scalar_lea.vmem [#allocation3], 1
        %v1453 = vld [vmem:[%s1452] ss:$2 sm:$0xff]
        %s1454 = scalar_lea.vmem [#allocation3], 17
        %v1455 = vld [vmem:[%s1454] ss:$2 sm:$0xff]
        %v1456 = vmax.f32 %v1449, %v1453
        %v1457 = vmax.f32 %v1451, %v1455
        %v1458 = vld [vmem:[%s7] sm:$0xff]
        %v1459 = vld [vmem:[%s7 + $0x8] sm:$0xff]
        %v1460 = vld [vmem:[%s7 + $0x10] sm:$0xff]
        %v1461 = vld [vmem:[%s7 + $0x18] sm:$0xff]
        %v1462 = vld [vmem:[%s8] sm:$0x1]
        %v1464 = vperm.slane %v1462, 0
        %v1467 = vsel %vm1444, %v1456, 0
        %v1470 = vsel %vm1444, %v1457, 0
        %1472 = vmatpush.msra.mxu0 0.0
        %1473 = vmatpush.msra.mxu0 0.0
        %1474 = vmatpush.msra.mxu0 0.0
        %1475 = vmatpush.msra.mxu0 0.0
        %1476 = vmatpush.msra.mxu0 0.0
        %1477 = vmatpush.msra.mxu0 0.0
        %1478 = vmatpush.msra.mxu0 0.0
        %1479 = vmatpush.msra.mxu0 0.0
        %1480 = vmatpush.msra.mxu0 0.0
        %1481 = vmatpush.msra.mxu0 0.0
        %1482 = vmatpush.msra.mxu0 0.0
        %1483 = vmatpush.msra.mxu0 0.0
        %1484 = vmatpush.msra.mxu0 %v1461
        %1485 = vmatpush.msra.mxu0 %v1460
        %1486 = vmatpush.msra.mxu0 %v1459
        %1487 = vmatpush.msra.mxu0 %v1458
        %1488 = vmatmul.f32.gmra.mxu0 %v1467
        %v1489 = vpop.f32.mrf.mxu0
        %v1490 = vadd.f32 %v1464, %v1489
        %1491 = vmatmul.f32.gmra.mxu0 %v1470
        %v1492 = vpop.f32.mrf.mxu0
        %v1493 = vadd.f32 %v1464, %v1492
        %1494 = vdwg.mxu0
        %v1495 = vmax.f32 %v1490, 0.0
        %v1496 = vmax.f32 %v1493, 0.0
        %v1498 = vrot.slane %v1495, 4
        %v1500 = vmax.f32 %v1495, %v1498
        %vm1501 = vcmask 125952
        %1502 = vst.msk [vmem:[#allocation4] sm:$0xf] %vm1501, %v1500
        %v1504 = vrot.slane %v1496, 4
        %v1506 = vmax.f32 %v1496, %v1504
        %1507 = vst.msk [vmem:[#allocation4 + $0x4] sm:$0xf] %vm1501, %v1506
        %v1508 = vld [vmem:[#allocation4] ss:$2 sm:$0xf]
        %s1509 = scalar_lea.vmem [#allocation4], 1
        %v1510 = vld [vmem:[%s1509] ss:$2 sm:$0xf]
        %v1511 = vmax.f32 %v1508, %v1510
        %v1512 = vld [vmem:[%s9] sm:$0xff]
        %v1513 = vld [vmem:[%s9 + $0x8] sm:$0xff]
        %v1514 = vld [vmem:[%s10] sm:$0x1]
        %v1516 = vperm.slane %v1514, 0
        %vm1518 = vcmask 130048
        %v1520 = vsel %vm1518, %v1511, 0
        %1522 = vmatpush.msra.mxu0 0.0
        %1523 = vmatpush.msra.mxu0 0.0
        %1524 = vmatpush.msra.mxu0 0.0
        %1525 = vmatpush.msra.mxu0 0.0
        %1526 = vmatpush.msra.mxu0 0.0
        %1527 = vmatpush.msra.mxu0 0.0
        %1528 = vmatpush.msra.mxu0 0.0
        %1529 = vmatpush.msra.mxu0 0.0
        %1530 = vmatpush.msra.mxu0 0.0
        %1531 = vmatpush.msra.mxu0 0.0
        %1532 = vmatpush.msra.mxu0 0.0
        %1533 = vmatpush.msra.mxu0 0.0
        %1534 = vmatpush.msra.mxu0 0.0
        %1535 = vmatpush.msra.mxu0 0.0
        %1536 = vmatpush.msra.mxu0 %v1513
        %1537 = vmatpush.msra.mxu0 %v1512
        %1538 = vmatmul.f32.gmra.mxu0 %v1520
        %v1539 = vpop.f32.mrf.mxu0
        %v1540 = vadd.f32 %v1516, %v1539
        %1541 = vdwg.mxu0
        %v1542 = vmax.f32 %v1540, 0.0
        %v1544 = vrot.slane %v1542, 2
        %v1546 = vmax.f32 %v1542, %v1544
        %vm1547 = vcmask 58368
        %1548 = vst.msk [vmem:[#allocation5] sm:$0x3] %vm1547, %v1546
        %v1549 = vld [vmem:[#allocation5] ss:$2 sm:$0x1]
        %s1550 = scalar_lea.vmem [#allocation5], 1
        %v1551 = vld [vmem:[%s1550] ss:$2 sm:$0x1]
        %v1552 = vmax.f32 %v1549, %v1551
        %vm1553 = vcmask 57344
        %1554 = vst.msk [vmem:[%s403] sm:$0x1] %vm1553, %v1552
        %s1555 = sand.u32 %s285, 1
        %s1556 = scalar_lea.sflag [#allocation7], %s1555
        %s1557 = sand.u32 %s285, 1
        %s1558 = scalar_lea.vmem [#allocation6], %s1557
        // Predicated region
        $region65: #{model_enc_forward.1} parent=63 // pred_check
          %p1559 = pneg %p295
        $region66: #{model_enc_forward.1} parent=63 // pred_check_branch
          %1561 = sbr.rel (%p1559) target = $region68
        $region67: #{model_enc_forward.1} parent=63 // pred_region
          %1563 = vsyncadd %s1556, 0
          %s1564 = sadd.s32 %s30, %s29
          %s1565 = scalar_lea.hbm %s11, %s1564
          %s1567 = sshll.u32 %s1558, 4
          %s1568 = int_to_ptr.vmem [resolvable:$true] %s1567
          %s1569 = sshll.u32 %s1565, 4
          %s1570 = int_to_ptr.hbm [resolvable:$true] %s1569
          %1572 = dma.vmem_to_hbm [thread:$0]  %s1568, 16, %s1570, %s1556
        $region68: #{model_enc_forward.1} parent=63 // pred_fallthru
          _
      $region64: #{model_enc_forward.1} parent=5 // pred_fallthru
        _
      %p1573 = scmp.le.s32.totalorder 2, %s20
      // Predicated region
      $region69: #{model_enc_forward.1} parent=5 // pred_check
        %p1574 = pneg %p1573
      $region70: #{model_enc_forward.1} parent=5 // pred_check_branch
        %1576 = sbr.rel (%p1574) target = $region72
      $region71: #{model_enc_forward.1} parent=5 // pred_region
        %s1577 = ssub.s32 %s20, 2
        // Predicated region
        $region73: #{model_enc_forward.1} parent=71 // pred_check
          %p1578 = pneg %p301
        $region74: #{model_enc_forward.1} parent=71 // pred_check_branch
          %1580 = sbr.rel (%p1578) target = $region76
        $region75: #{model_enc_forward.1} parent=71 // pred_region
          %s1581 = sand.u32 %s286, 1
          %s1582 = scalar_lea.sflag [#allocation7], %s1581
          %s1583 = sand.u32 %s286, 1
          %s1584 = scalar_lea.vmem [#allocation6], %s1583
          %1586 = dma.done %s1582, 16
        $region76: #{model_enc_forward.1} parent=71 // pred_fallthru
          _
      $region72: #{model_enc_forward.1} parent=5 // pred_fallthru
        _
    $region6: #{model_enc_forward.1} parent=1 // loop_footer
      %s24 = sadd.s32 1, %s20
    $region7: #{model_enc_forward.1} parent=1 // loop_footer_branch
      %19 = sbr.rel target = $region3
    $region8: #{model_enc_forward.1} parent=1 // loop_exit
      _
    %1587 = vsyncpa [#allocation7], 1
    %s1588 = scalar_lea.sflag [#allocation7], 1
    %1589 = vsyncpa %s1588, 1

</llo_original>
